<compile_context>
chip_gen: v5e
topology: v5e:2x2
jax: 0.10.0
libtpu: 0.0.40
codegen_flags: <defaults>
</compile_context>

<pallas_src>
import jax
import jax.numpy as jnp
from jax import lax
from jax.experimental import pallas as pl
from jax.experimental.pallas import tpu as pltpu


def _make_kernel(Cin, Cconv, Cout, Th, Wo):
    """Builds the per-tile kernel for static (Cin, Cconv, Cout, Th, Wo)."""
    Wo1 = Wo + 1

    def kernel(xe_ref, xo_ref, w_ref, bc_ref, sp_ref, bp_ref, out_ref, p_ref):
        # xe_ref: (Th+1, 2*Cin, Wo1) even padded rows, channels = [EE ; EO]
        # xo_ref: (Th,   2*Cin, Wo1) odd  padded rows, channels = [OE ; OO]
        # w_ref : (Cconv, 9*Cin)     BN-folded conv weights
        # bc_ref: (Cconv, 1)  folded conv bias;  sp_ref/bp_ref: (Cin, 1) pool scale/bias
        # out_ref: (Cout, Th*Wo)     lane-dense NCHW tile
        # p_ref : (9*Cin, Th*Wo)     VMEM scratch: in-kernel im2col
        for t in range(Th):
            cols = slice(t * Wo, (t + 1) * Wo)
            e0 = xe_ref[t]          # even padded row 2*oh      -> taps kh=0
            o0 = xo_ref[t]          # odd  padded row 2*oh + 1  -> taps kh=1
            e1 = xe_ref[t + 1]      # even padded row 2*oh + 2  -> taps kh=2
            # kh = 0
            p_ref[0 * Cin:1 * Cin, cols] = e0[0:Cin, 0:Wo]          # (0,0) EE[oh, ow]
            p_ref[1 * Cin:2 * Cin, cols] = e0[Cin:2 * Cin, 0:Wo]    # (0,1) EO[oh, ow]
            p_ref[2 * Cin:3 * Cin, cols] = e0[0:Cin, 1:Wo1]         # (0,2) EE[oh, ow+1]
            # kh = 1
            p_ref[3 * Cin:4 * Cin, cols] = o0[0:Cin, 0:Wo]          # (1,0) OE[oh, ow]
            p_ref[4 * Cin:5 * Cin, cols] = o0[Cin:2 * Cin, 0:Wo]    # (1,1) OO[oh, ow]
            p_ref[5 * Cin:6 * Cin, cols] = o0[0:Cin, 1:Wo1]         # (1,2) OE[oh, ow+1]
            # kh = 2
            p_ref[6 * Cin:7 * Cin, cols] = e1[0:Cin, 0:Wo]          # (2,0) EE[oh+1, ow]
            p_ref[7 * Cin:8 * Cin, cols] = e1[Cin:2 * Cin, 0:Wo]    # (2,1) EO[oh+1, ow]
            p_ref[8 * Cin:9 * Cin, cols] = e1[0:Cin, 1:Wo1]         # (2,2) EE[oh+1, ow+1]

        # conv = one MXU matmul over all 9 taps, f32 accumulation
        conv = jnp.dot(w_ref[...], p_ref[...],
                       preferred_element_type=jnp.float32)          # (Cconv, T)
        y_conv = conv + bc_ref[...]

        # 2x2 max-pool window == conv taps (1,1), (1,2), (2,1), (2,2): already in P.
        pooled = jnp.maximum(
            jnp.maximum(p_ref[4 * Cin:5 * Cin, :], p_ref[5 * Cin:6 * Cin, :]),
            jnp.maximum(p_ref[7 * Cin:8 * Cin, :], p_ref[8 * Cin:9 * Cin, :]),
        ).astype(jnp.float32)                                        # (Cin, T)
        y_pool = pooled * sp_ref[...] + bp_ref[...]

        out_ref[0:Cconv, :] = jnp.maximum(y_conv, 0.0).astype(out_ref.dtype)
        out_ref[Cconv:Cout, :] = jnp.maximum(y_pool, 0.0).astype(out_ref.dtype)

    return kernel


def downsampler_block(x, w, b, gamma, beta, running_mean, running_var,
                      *, compute_dtype=jnp.float32):
    """x: (N, Cin, H, W) NCHW; w: (Cconv, Cin, 3, 3) PyTorch OIHW. Returns NCHW."""
    N, Cin, H, W = x.shape
    Cconv = w.shape[0]
    Cout = Cconv + Cin
    if H % 2 or W % 2:
        raise ValueError("DownsamplerBlock requires even H and W (PyTorch module "
                         "cannot concat conv/pool outputs otherwise).")
    Ho, Wo = H // 2, W // 2
    Wo1 = Wo + 1
    HW = Ho * Wo
    K = 9 * Cin
    out_dtype = x.dtype
    in_bytes = jnp.dtype(compute_dtype).itemsize
    out_bytes = jnp.dtype(out_dtype).itemsize

    # ---- fold conv bias + BatchNorm (eval mode, eps=1e-3: ERFNet BatchNorm2d) ------
    s = gamma * lax.rsqrt(running_var + 1e-3)                        # (Cout,)
    w_fold = (jnp.transpose(w, (0, 2, 3, 1)).reshape(Cconv, K)
              * s[:Cconv, None]).astype(compute_dtype)               # (Cconv, 9*Cin)
    bias_conv = ((b - running_mean[:Cconv]) * s[:Cconv] + beta[:Cconv]
                 ).astype(jnp.float32).reshape(Cconv, 1)
    scale_pool = s[Cconv:].astype(jnp.float32).reshape(Cin, 1)
    bias_pool = (beta[Cconv:] - running_mean[Cconv:] * s[Cconv:]
                 ).astype(jnp.float32).reshape(Cin, 1)

    # ---- generation-aware row-tile selection -----------------------------------
    try:
        vmem_phys = int(pltpu.get_tpu_info().vmem_capacity_bytes)
    except Exception:                                                # noqa: BLE001
        vmem_phys = 64 * 1024 * 1024      # conservative: v7x per-TensorCore VMEM
    budget = int(0.45 * vmem_phys)

    def footprint(th):
        t = th * Wo
        per_in = 2 * Cin * (2 * th + 1) * Wo1 * in_bytes             # xe + xo blocks
        per_out = Cout * t * out_bytes
        params = Cconv * K * in_bytes + (Cconv + 2 * Cin) * 4
        scratch = K * t * in_bytes
        return 2 * (per_in + per_out + params) + scratch             # double-buffered I/O

    def valid(th):
        return Ho % th == 0 and ((th * Wo) % 128 == 0 or th == Ho)

    Th = None
    for th in range(min(Ho, 32), 0, -1):     # cap keeps the unrolled tap loop small
        if valid(th) and footprint(th) <= budget:
            Th = th
            break
    if Th is None:                            # nothing fits budget: smallest legal tile
        Th = next(th for th in range(1, Ho + 1) if valid(th))
    n_r = Ho // Th
    T = Th * Wo

    # ---- glue: parity-split padded input (~1x raw input, vs 9x im2col before) ----
    xp = jnp.pad(x, ((0, 0), (0, 0), (1, 1), (1, 1)))                # (N,Cin,H+2,W+2)
    xe_rows = xp[:, :, 0:2 * Ho + 1:2, :]                            # even padded rows
    xo_rows = xp[:, :, 1:2 * Ho:2, :]                                # odd  padded rows

    def col_split(a):                         # -> even cols (Wo+1), odd cols (Wo+1)
        return a[..., 0:2 * Wo + 1:2], a[..., 1:2 * Wo + 2:2]

    EE, EO = col_split(xe_rows)
    OE, OO = col_split(xo_rows)
    E = jnp.transpose(jnp.concatenate([EE, EO], axis=1), (0, 2, 1, 3))  # (N,Ho+1,2Cin,Wo1)
    O = jnp.transpose(jnp.concatenate([OE, OO], axis=1), (0, 2, 1, 3))  # (N,Ho,  2Cin,Wo1)
    # Shingle the even-row slab: row tile r needs rows [r*Th, r*Th + Th] (1-row halo).
    xe = jnp.stack([lax.dynamic_slice_in_dim(E, r * Th, Th + 1, axis=1)
                    for r in range(n_r)], axis=1).astype(compute_dtype)  # (N,n_r,Th+1,2Cin,Wo1)
    xo = O.astype(compute_dtype)                                         # (N,Ho,2Cin,Wo1)

    vmem_limit = int(max(32 * 2**20,
                         min(0.85 * vmem_phys, footprint(Th) + 24 * 2**20)))

    kernel = _make_kernel(Cin, Cconv, Cout, Th, Wo)
    out = pl.pallas_call(
        kernel,
        out_shape=jax.ShapeDtypeStruct((N, Cout, HW), out_dtype),
        grid_spec=pltpu.PrefetchScalarGridSpec(
            num_scalar_prefetch=0,
            grid=(N, n_r),
            in_specs=[
                pl.BlockSpec((None, None, Th + 1, 2 * Cin, Wo1),
                             lambda n, r: (n, r, 0, 0, 0)),
                pl.BlockSpec((None, Th, 2 * Cin, Wo1), lambda n, r: (n, r, 0, 0)),
                pl.BlockSpec((Cconv, K), lambda n, r: (0, 0)),
                pl.BlockSpec((Cconv, 1), lambda n, r: (0, 0)),
                pl.BlockSpec((Cin, 1), lambda n, r: (0, 0)),
                pl.BlockSpec((Cin, 1), lambda n, r: (0, 0)),
            ],
            out_specs=pl.BlockSpec((None, Cout, T), lambda n, r: (n, 0, r)),
            scratch_shapes=[pltpu.VMEM((K, T), compute_dtype)],
        ),
        compiler_params=pltpu.CompilerParams(
            dimension_semantics=("parallel", "parallel"),
            vmem_limit_bytes=vmem_limit),
    )(xe, xo, w_fold, bias_conv, scale_pool, bias_pool)

    # Tiles exactly cover Ho*Wo: no padding to strip; reshape is a free view to NCHW.
    return out.reshape(N, Cout, Ho, Wo)


def _reference(x, w, b, gamma, beta, mean, var):
    """Pure-JAX reference (NCHW), mirrors the PyTorch forward (eval-mode BN)."""
    conv = lax.conv_general_dilated(
        x, w, window_strides=(2, 2), padding=((1, 1), (1, 1)),
        dimension_numbers=("NCHW", "OIHW", "NCHW")) + b.reshape(1, -1, 1, 1)
    pool = lax.reduce_window(x, -jnp.inf, lax.max,
                             (1, 1, 2, 2), (1, 1, 2, 2), "VALID")
    y = jnp.concatenate([conv, pool], axis=1)
    y = ((y - mean.reshape(1, -1, 1, 1))
         * lax.rsqrt(var.reshape(1, -1, 1, 1) + 1e-3)
         * gamma.reshape(1, -1, 1, 1) + beta.reshape(1, -1, 1, 1))
    return jnp.maximum(y, 0.0)


if __name__ == "__main__":
    N, Cin, H, W = 2, 4, 16, 16
    Cout = 16                      # noutput
    Cconv = Cout - Cin             # conv output channels

    key = jax.random.PRNGKey(0)
    kx, kw, kb, kg, kbe, km, kv = jax.random.split(key, 7)

    x = jax.random.normal(kx, (N, Cin, H, W), jnp.float32)
    w = jax.random.normal(kw, (Cconv, Cin, 3, 3), jnp.float32) * 0.2
    b = jax.random.normal(kb, (Cconv,), jnp.float32) * 0.1
    gamma = jax.random.normal(kg, (Cout,), jnp.float32) * 0.1 + 1.0
    beta = jax.random.normal(kbe, (Cout,), jnp.float32) * 0.1
    running_mean = jax.random.normal(km, (Cout,), jnp.float32) * 0.1
    running_var = jnp.abs(jax.random.normal(kv, (Cout,), jnp.float32)) + 0.5

    fn = jax.jit(downsampler_block)
    out = fn(x, w, b, gamma, beta, running_mean, running_var)
    out = jax.block_until_ready(out)

    ref = _reference(x, w, b, gamma, beta, running_mean, running_var)
    if not bool(jnp.allclose(out, ref, atol=1e-4, rtol=1e-4)):
        raise AssertionError("Pallas kernel does not match JAX reference")

    print("KERNEL_OK")
</pallas_src>

<mosaic_0001>
module attributes {stable_mosaic.version = 11 : i64} {
  func.func @kernel(%arg0: i32, %arg1: i32, %arg2: memref<1x1x9x8x9xf32, #tpu.memory_space<vmem>>, %arg3: memref<1x8x8x9xf32, #tpu.memory_space<vmem>>, %arg4: memref<12x36xf32, #tpu.memory_space<vmem>>, %arg5: memref<12x1xf32, #tpu.memory_space<vmem>>, %arg6: memref<4x1xf32, #tpu.memory_space<vmem>>, %arg7: memref<4x1xf32, #tpu.memory_space<vmem>>, %arg8: memref<1x16x64xf32, #tpu.memory_space<vmem>>, %arg9: memref<36x64xf32, #tpu.memory_space<vmem>>) attributes {dimension_semantics = [#tpu.dimension_semantics<parallel>, #tpu.dimension_semantics<parallel>], iteration_bounds = array<i64: 2, 1>, scalar_prefetch = 0 : i64, scratch_operands = 1 : i64, tpu.core_type = #tpu.core_type<tc>, window_params = [{transform_indices = @transform_0, window_bounds = array<i64: 1, 1, 9, 8, 9>}, {transform_indices = @transform_1, window_bounds = array<i64: 1, 8, 8, 9>}, {pipeline_mode = #tpu.pipeline_mode<synchronous>, transform_indices = @transform_2, window_bounds = array<i64: 12, 36>}, {pipeline_mode = #tpu.pipeline_mode<synchronous>, transform_indices = @transform_3, window_bounds = array<i64: 12, 1>}, {pipeline_mode = #tpu.pipeline_mode<synchronous>, transform_indices = @transform_4, window_bounds = array<i64: 4, 1>}, {pipeline_mode = #tpu.pipeline_mode<synchronous>, transform_indices = @transform_5, window_bounds = array<i64: 4, 1>}, {transform_indices = @transform_6, window_bounds = array<i64: 1, 16, 64>}]} {
    %c0 = arith.constant 0 : index
    %c0_0 = arith.constant 0 : index
    %c0_1 = arith.constant 0 : index
    %c0_2 = arith.constant 0 : index
    %c0_3 = arith.constant 0 : index
    %0 = vector.load %arg2[%c0, %c0_0, %c0_1, %c0_2, %c0_3] : memref<1x1x9x8x9xf32, #tpu.memory_space<vmem>>, vector<1x1x1x8x9xf32>
    %1 = vector.shape_cast %0 : vector<1x1x1x8x9xf32> to vector<8x9xf32>
    %c0_4 = arith.constant 0 : index
    %c0_5 = arith.constant 0 : index
    %c0_6 = arith.constant 0 : index
    %c0_7 = arith.constant 0 : index
    %2 = vector.load %arg3[%c0_4, %c0_5, %c0_6, %c0_7] : memref<1x8x8x9xf32, #tpu.memory_space<vmem>>, vector<1x1x8x9xf32>
    %3 = vector.shape_cast %2 : vector<1x1x8x9xf32> to vector<8x9xf32>
    %c0_8 = arith.constant 0 : index
    %c0_9 = arith.constant 0 : index
    %c1 = arith.constant 1 : index
    %c0_10 = arith.constant 0 : index
    %c0_11 = arith.constant 0 : index
    %4 = vector.load %arg2[%c0_8, %c0_9, %c1, %c0_10, %c0_11] : memref<1x1x9x8x9xf32, #tpu.memory_space<vmem>>, vector<1x1x1x8x9xf32>
    %5 = vector.shape_cast %4 : vector<1x1x1x8x9xf32> to vector<8x9xf32>
    %6 = vector.extract_strided_slice %1 {offsets = [0, 0], sizes = [4, 8], strides = [1, 1]} : vector<8x9xf32> to vector<4x8xf32>
    %c0_12 = arith.constant 0 : index
    %c0_13 = arith.constant 0 : index
    %7 = vector.load %arg9[%c0_12, %c0_13] : memref<36x64xf32, #tpu.memory_space<vmem>>, vector<4x8xf32>
    tpu.vector_store %arg9[%c0_12, %c0_13], %6 {strides = array<i32>} : memref<36x64xf32, #tpu.memory_space<vmem>>, vector<4x8xf32>,
    %8 = vector.extract_strided_slice %1 {offsets = [4, 0], sizes = [4, 8], strides = [1, 1]} : vector<8x9xf32> to vector<4x8xf32>
    %c4 = arith.constant 4 : index
    %c0_14 = arith.constant 0 : index
    %9 = vector.load %arg9[%c4, %c0_14] : memref<36x64xf32, #tpu.memory_space<vmem>>, vector<4x8xf32>
    tpu.vector_store %arg9[%c4, %c0_14], %8 {strides = array<i32>} : memref<36x64xf32, #tpu.memory_space<vmem>>, vector<4x8xf32>,
    %10 = vector.extract_strided_slice %1 {offsets = [0, 1], sizes = [4, 8], strides = [1, 1]} : vector<8x9xf32> to vector<4x8xf32>
    %c8 = arith.constant 8 : index
    %c0_15 = arith.constant 0 : index
    %11 = vector.load %arg9[%c8, %c0_15] : memref<36x64xf32, #tpu.memory_space<vmem>>, vector<4x8xf32>
    tpu.vector_store %arg9[%c8, %c0_15], %10 {strides = array<i32>} : memref<36x64xf32, #tpu.memory_space<vmem>>, vector<4x8xf32>,
    %12 = vector.extract_strided_slice %3 {offsets = [0, 0], sizes = [4, 8], strides = [1, 1]} : vector<8x9xf32> to vector<4x8xf32>
    %c12 = arith.constant 12 : index
    %c0_16 = arith.constant 0 : index
    %13 = vector.load %arg9[%c12, %c0_16] : memref<36x64xf32, #tpu.memory_space<vmem>>, vector<4x8xf32>
    tpu.vector_store %arg9[%c12, %c0_16], %12 {strides = array<i32>} : memref<36x64xf32, #tpu.memory_space<vmem>>, vector<4x8xf32>,
    %14 = vector.extract_strided_slice %3 {offsets = [4, 0], sizes = [4, 8], strides = [1, 1]} : vector<8x9xf32> to vector<4x8xf32>
    %c16 = arith.constant 16 : index
    %c0_17 = arith.constant 0 : index
    %15 = vector.load %arg9[%c16, %c0_17] : memref<36x64xf32, #tpu.memory_space<vmem>>, vector<4x8xf32>
    tpu.vector_store %arg9[%c16, %c0_17], %14 {strides = array<i32>} : memref<36x64xf32, #tpu.memory_space<vmem>>, vector<4x8xf32>,
    %16 = vector.extract_strided_slice %3 {offsets = [0, 1], sizes = [4, 8], strides = [1, 1]} : vector<8x9xf32> to vector<4x8xf32>
    %c20 = arith.constant 20 : index
    %c0_18 = arith.constant 0 : index
    %17 = vector.load %arg9[%c20, %c0_18] : memref<36x64xf32, #tpu.memory_space<vmem>>, vector<4x8xf32>
    tpu.vector_store %arg9[%c20, %c0_18], %16 {strides = array<i32>} : memref<36x64xf32, #tpu.memory_space<vmem>>, vector<4x8xf32>,
    %18 = vector.extract_strided_slice %5 {offsets = [0, 0], sizes = [4, 8], strides = [1, 1]} : vector<8x9xf32> to vector<4x8xf32>
    %c24 = arith.constant 24 : index
    %c0_19 = arith.constant 0 : index
    %19 = vector.load %arg9[%c24, %c0_19] : memref<36x64xf32, #tpu.memory_space<vmem>>, vector<4x8xf32>
    tpu.vector_store %arg9[%c24, %c0_19], %18 {strides = array<i32>} : memref<36x64xf32, #tpu.memory_space<vmem>>, vector<4x8xf32>,
    %20 = vector.extract_strided_slice %5 {offsets = [4, 0], sizes = [4, 8], strides = [1, 1]} : vector<8x9xf32> to vector<4x8xf32>
    %c28 = arith.constant 28 : index
    %c0_20 = arith.constant 0 : index
    %21 = vector.load %arg9[%c28, %c0_20] : memref<36x64xf32, #tpu.memory_space<vmem>>, vector<4x8xf32>
    tpu.vector_store %arg9[%c28, %c0_20], %20 {strides = array<i32>} : memref<36x64xf32, #tpu.memory_space<vmem>>, vector<4x8xf32>,
    %22 = vector.extract_strided_slice %5 {offsets = [0, 1], sizes = [4, 8], strides = [1, 1]} : vector<8x9xf32> to vector<4x8xf32>
    %c32 = arith.constant 32 : index
    %c0_21 = arith.constant 0 : index
    %23 = vector.load %arg9[%c32, %c0_21] : memref<36x64xf32, #tpu.memory_space<vmem>>, vector<4x8xf32>
    tpu.vector_store %arg9[%c32, %c0_21], %22 {strides = array<i32>} : memref<36x64xf32, #tpu.memory_space<vmem>>, vector<4x8xf32>,
    %c0_22 = arith.constant 0 : index
    %c0_23 = arith.constant 0 : index
    %c1_24 = arith.constant 1 : index
    %c0_25 = arith.constant 0 : index
    %c0_26 = arith.constant 0 : index
    %24 = vector.load %arg2[%c0_22, %c0_23, %c1_24, %c0_25, %c0_26] : memref<1x1x9x8x9xf32, #tpu.memory_space<vmem>>, vector<1x1x1x8x9xf32>
    %25 = vector.shape_cast %24 : vector<1x1x1x8x9xf32> to vector<8x9xf32>
    %c0_27 = arith.constant 0 : index
    %c1_28 = arith.constant 1 : index
    %c0_29 = arith.constant 0 : index
    %c0_30 = arith.constant 0 : index
    %26 = vector.load %arg3[%c0_27, %c1_28, %c0_29, %c0_30] : memref<1x8x8x9xf32, #tpu.memory_space<vmem>>, vector<1x1x8x9xf32>
    %27 = vector.shape_cast %26 : vector<1x1x8x9xf32> to vector<8x9xf32>
    %c0_31 = arith.constant 0 : index
    %c0_32 = arith.constant 0 : index
    %c2 = arith.constant 2 : index
    %c0_33 = arith.constant 0 : index
    %c0_34 = arith.constant 0 : index
    %28 = vector.load %arg2[%c0_31, %c0_32, %c2, %c0_33, %c0_34] : memref<1x1x9x8x9xf32, #tpu.memory_space<vmem>>, vector<1x1x1x8x9xf32>
    %29 = vector.shape_cast %28 : vector<1x1x1x8x9xf32> to vector<8x9xf32>
    %30 = vector.extract_strided_slice %25 {offsets = [0, 0], sizes = [4, 8], strides = [1, 1]} : vector<8x9xf32> to vector<4x8xf32>
    %c0_35 = arith.constant 0 : index
    %c8_36 = arith.constant 8 : index
    %31 = vector.load %arg9[%c0_35, %c8_36] : memref<36x64xf32, #tpu.memory_space<vmem>>, vector<4x8xf32>
    tpu.vector_store %arg9[%c0_35, %c8_36], %30 {strides = array<i32>} : memref<36x64xf32, #tpu.memory_space<vmem>>, vector<4x8xf32>,
    %32 = vector.extract_strided_slice %25 {offsets = [4, 0], sizes = [4, 8], strides = [1, 1]} : vector<8x9xf32> to vector<4x8xf32>
    %c4_37 = arith.constant 4 : index
    %c8_38 = arith.constant 8 : index
    %33 = vector.load %arg9[%c4_37, %c8_38] : memref<36x64xf32, #tpu.memory_space<vmem>>, vector<4x8xf32>
    tpu.vector_store %arg9[%c4_37, %c8_38], %32 {strides = array<i32>} : memref<36x64xf32, #tpu.memory_space<vmem>>, vector<4x8xf32>,
    %34 = vector.extract_strided_slice %25 {offsets = [0, 1], sizes = [4, 8], strides = [1, 1]} : vector<8x9xf32> to vector<4x8xf32>
    %c8_39 = arith.constant 8 : index
    %c8_40 = arith.constant 8 : index
    %35 = vector.load %arg9[%c8_39, %c8_40] : memref<36x64xf32, #tpu.memory_space<vmem>>, vector<4x8xf32>
    tpu.vector_store %arg9[%c8_39, %c8_40], %34 {strides = array<i32>} : memref<36x64xf32, #tpu.memory_space<vmem>>, vector<4x8xf32>,
    %36 = vector.extract_strided_slice %27 {offsets = [0, 0], sizes = [4, 8], strides = [1, 1]} : vector<8x9xf32> to vector<4x8xf32>
    %c12_41 = arith.constant 12 : index
    %c8_42 = arith.constant 8 : index
    %37 = vector.load %arg9[%c12_41, %c8_42] : memref<36x64xf32, #tpu.memory_space<vmem>>, vector<4x8xf32>
    tpu.vector_store %arg9[%c12_41, %c8_42], %36 {strides = array<i32>} : memref<36x64xf32, #tpu.memory_space<vmem>>, vector<4x8xf32>,
    %38 = vector.extract_strided_slice %27 {offsets = [4, 0], sizes = [4, 8], strides = [1, 1]} : vector<8x9xf32> to vector<4x8xf32>
    %c16_43 = arith.constant 16 : index
    %c8_44 = arith.constant 8 : index
    %39 = vector.load %arg9[%c16_43, %c8_44] : memref<36x64xf32, #tpu.memory_space<vmem>>, vector<4x8xf32>
    tpu.vector_store %arg9[%c16_43, %c8_44], %38 {strides = array<i32>} : memref<36x64xf32, #tpu.memory_space<vmem>>, vector<4x8xf32>,
    %40 = vector.extract_strided_slice %27 {offsets = [0, 1], sizes = [4, 8], strides = [1, 1]} : vector<8x9xf32> to vector<4x8xf32>
    %c20_45 = arith.constant 20 : index
    %c8_46 = arith.constant 8 : index
    %41 = vector.load %arg9[%c20_45, %c8_46] : memref<36x64xf32, #tpu.memory_space<vmem>>, vector<4x8xf32>
    tpu.vector_store %arg9[%c20_45, %c8_46], %40 {strides = array<i32>} : memref<36x64xf32, #tpu.memory_space<vmem>>, vector<4x8xf32>,
    %42 = vector.extract_strided_slice %29 {offsets = [0, 0], sizes = [4, 8], strides = [1, 1]} : vector<8x9xf32> to vector<4x8xf32>
    %c24_47 = arith.constant 24 : index
    %c8_48 = arith.constant 8 : index
    %43 = vector.load %arg9[%c24_47, %c8_48] : memref<36x64xf32, #tpu.memory_space<vmem>>, vector<4x8xf32>
    tpu.vector_store %arg9[%c24_47, %c8_48], %42 {strides = array<i32>} : memref<36x64xf32, #tpu.memory_space<vmem>>, vector<4x8xf32>,
    %44 = vector.extract_strided_slice %29 {offsets = [4, 0], sizes = [4, 8], strides = [1, 1]} : vector<8x9xf32> to vector<4x8xf32>
    %c28_49 = arith.constant 28 : index
    %c8_50 = arith.constant 8 : index
    %45 = vector.load %arg9[%c28_49, %c8_50] : memref<36x64xf32, #tpu.memory_space<vmem>>, vector<4x8xf32>
    tpu.vector_store %arg9[%c28_49, %c8_50], %44 {strides = array<i32>} : memref<36x64xf32, #tpu.memory_space<vmem>>, vector<4x8xf32>,
    %46 = vector.extract_strided_slice %29 {offsets = [0, 1], sizes = [4, 8], strides = [1, 1]} : vector<8x9xf32> to vector<4x8xf32>
    %c32_51 = arith.constant 32 : index
    %c8_52 = arith.constant 8 : index
    %47 = vector.load %arg9[%c32_51, %c8_52] : memref<36x64xf32, #tpu.memory_space<vmem>>, vector<4x8xf32>
    tpu.vector_store %arg9[%c32_51, %c8_52], %46 {strides = array<i32>} : memref<36x64xf32, #tpu.memory_space<vmem>>, vector<4x8xf32>,
    %c0_53 = arith.constant 0 : index
    %c0_54 = arith.constant 0 : index
    %c2_55 = arith.constant 2 : index
    %c0_56 = arith.constant 0 : index
    %c0_57 = arith.constant 0 : index
    %48 = vector.load %arg2[%c0_53, %c0_54, %c2_55, %c0_56, %c0_57] : memref<1x1x9x8x9xf32, #tpu.memory_space<vmem>>, vector<1x1x1x8x9xf32>
    %49 = vector.shape_cast %48 : vector<1x1x1x8x9xf32> to vector<8x9xf32>
    %c0_58 = arith.constant 0 : index
    %c2_59 = arith.constant 2 : index
    %c0_60 = arith.constant 0 : index
    %c0_61 = arith.constant 0 : index
    %50 = vector.load %arg3[%c0_58, %c2_59, %c0_60, %c0_61] : memref<1x8x8x9xf32, #tpu.memory_space<vmem>>, vector<1x1x8x9xf32>
    %51 = vector.shape_cast %50 : vector<1x1x8x9xf32> to vector<8x9xf32>
    %c0_62 = arith.constant 0 : index
    %c0_63 = arith.constant 0 : index
    %c3 = arith.constant 3 : index
    %c0_64 = arith.constant 0 : index
    %c0_65 = arith.constant 0 : index
    %52 = vector.load %arg2[%c0_62, %c0_63, %c3, %c0_64, %c0_65] : memref<1x1x9x8x9xf32, #tpu.memory_space<vmem>>, vector<1x1x1x8x9xf32>
    %53 = vector.shape_cast %52 : vector<1x1x1x8x9xf32> to vector<8x9xf32>
    %54 = vector.extract_strided_slice %49 {offsets = [0, 0], sizes = [4, 8], strides = [1, 1]} : vector<8x9xf32> to vector<4x8xf32>
    %c0_66 = arith.constant 0 : index
    %c16_67 = arith.constant 16 : index
    %55 = vector.load %arg9[%c0_66, %c16_67] : memref<36x64xf32, #tpu.memory_space<vmem>>, vector<4x8xf32>
    tpu.vector_store %arg9[%c0_66, %c16_67], %54 {strides = array<i32>} : memref<36x64xf32, #tpu.memory_space<vmem>>, vector<4x8xf32>,
    %56 = vector.extract_strided_slice %49 {offsets = [4, 0], sizes = [4, 8], strides = [1, 1]} : vector<8x9xf32> to vector<4x8xf32>
    %c4_68 = arith.constant 4 : index
    %c16_69 = arith.constant 16 : index
    %57 = vector.load %arg9[%c4_68, %c16_69] : memref<36x64xf32, #tpu.memory_space<vmem>>, vector<4x8xf32>
    tpu.vector_store %arg9[%c4_68, %c16_69], %56 {strides = array<i32>} : memref<36x64xf32, #tpu.memory_space<vmem>>, vector<4x8xf32>,
    %58 = vector.extract_strided_slice %49 {offsets = [0, 1], sizes = [4, 8], strides = [1, 1]} : vector<8x9xf32> to vector<4x8xf32>
    %c8_70 = arith.constant 8 : index
    %c16_71 = arith.constant 16 : index
    %59 = vector.load %arg9[%c8_70, %c16_71] : memref<36x64xf32, #tpu.memory_space<vmem>>, vector<4x8xf32>
    tpu.vector_store %arg9[%c8_70, %c16_71], %58 {strides = array<i32>} : memref<36x64xf32, #tpu.memory_space<vmem>>, vector<4x8xf32>,
    %60 = vector.extract_strided_slice %51 {offsets = [0, 0], sizes = [4, 8], strides = [1, 1]} : vector<8x9xf32> to vector<4x8xf32>
    %c12_72 = arith.constant 12 : index
    %c16_73 = arith.constant 16 : index
    %61 = vector.load %arg9[%c12_72, %c16_73] : memref<36x64xf32, #tpu.memory_space<vmem>>, vector<4x8xf32>
    tpu.vector_store %arg9[%c12_72, %c16_73], %60 {strides = array<i32>} : memref<36x64xf32, #tpu.memory_space<vmem>>, vector<4x8xf32>,
    %62 = vector.extract_strided_slice %51 {offsets = [4, 0], sizes = [4, 8], strides = [1, 1]} : vector<8x9xf32> to vector<4x8xf32>
    %c16_74 = arith.constant 16 : index
    %c16_75 = arith.constant 16 : index
    %63 = vector.load %arg9[%c16_74, %c16_75] : memref<36x64xf32, #tpu.memory_space<vmem>>, vector<4x8xf32>
    tpu.vector_store %arg9[%c16_74, %c16_75], %62 {strides = array<i32>} : memref<36x64xf32, #tpu.memory_space<vmem>>, vector<4x8xf32>,
    %64 = vector.extract_strided_slice %51 {offsets = [0, 1], sizes = [4, 8], strides = [1, 1]} : vector<8x9xf32> to vector<4x8xf32>
    %c20_76 = arith.constant 20 : index
    %c16_77 = arith.constant 16 : index
    %65 = vector.load %arg9[%c20_76, %c16_77] : memref<36x64xf32, #tpu.memory_space<vmem>>, vector<4x8xf32>
    tpu.vector_store %arg9[%c20_76, %c16_77], %64 {strides = array<i32>} : memref<36x64xf32, #tpu.memory_space<vmem>>, vector<4x8xf32>,
    %66 = vector.extract_strided_slice %53 {offsets = [0, 0], sizes = [4, 8], strides = [1, 1]} : vector<8x9xf32> to vector<4x8xf32>
    %c24_78 = arith.constant 24 : index
    %c16_79 = arith.constant 16 : index
    %67 = vector.load %arg9[%c24_78, %c16_79] : memref<36x64xf32, #tpu.memory_space<vmem>>, vector<4x8xf32>
    tpu.vector_store %arg9[%c24_78, %c16_79], %66 {strides = array<i32>} : memref<36x64xf32, #tpu.memory_space<vmem>>, vector<4x8xf32>,
    %68 = vector.extract_strided_slice %53 {offsets = [4, 0], sizes = [4, 8], strides = [1, 1]} : vector<8x9xf32> to vector<4x8xf32>
    %c28_80 = arith.constant 28 : index
    %c16_81 = arith.constant 16 : index
    %69 = vector.load %arg9[%c28_80, %c16_81] : memref<36x64xf32, #tpu.memory_space<vmem>>, vector<4x8xf32>
    tpu.vector_store %arg9[%c28_80, %c16_81], %68 {strides = array<i32>} : memref<36x64xf32, #tpu.memory_space<vmem>>, vector<4x8xf32>,
    %70 = vector.extract_strided_slice %53 {offsets = [0, 1], sizes = [4, 8], strides = [1, 1]} : vector<8x9xf32> to vector<4x8xf32>
    %c32_82 = arith.constant 32 : index
    %c16_83 = arith.constant 16 : index
    %71 = vector.load %arg9[%c32_82, %c16_83] : memref<36x64xf32, #tpu.memory_space<vmem>>, vector<4x8xf32>
    tpu.vector_store %arg9[%c32_82, %c16_83], %70 {strides = array<i32>} : memref<36x64xf32, #tpu.memory_space<vmem>>, vector<4x8xf32>,
    %c0_84 = arith.constant 0 : index
    %c0_85 = arith.constant 0 : index
    %c3_86 = arith.constant 3 : index
    %c0_87 = arith.constant 0 : index
    %c0_88 = arith.constant 0 : index
    %72 = vector.load %arg2[%c0_84, %c0_85, %c3_86, %c0_87, %c0_88] : memref<1x1x9x8x9xf32, #tpu.memory_space<vmem>>, vector<1x1x1x8x9xf32>
    %73 = vector.shape_cast %72 : vector<1x1x1x8x9xf32> to vector<8x9xf32>
    %c0_89 = arith.constant 0 : index
    %c3_90 = arith.constant 3 : index
    %c0_91 = arith.constant 0 : index
    %c0_92 = arith.constant 0 : index
    %74 = vector.load %arg3[%c0_89, %c3_90, %c0_91, %c0_92] : memref<1x8x8x9xf32, #tpu.memory_space<vmem>>, vector<1x1x8x9xf32>
    %75 = vector.shape_cast %74 : vector<1x1x8x9xf32> to vector<8x9xf32>
    %c0_93 = arith.constant 0 : index
    %c0_94 = arith.constant 0 : index
    %c4_95 = arith.constant 4 : index
    %c0_96 = arith.constant 0 : index
    %c0_97 = arith.constant 0 : index
    %76 = vector.load %arg2[%c0_93, %c0_94, %c4_95, %c0_96, %c0_97] : memref<1x1x9x8x9xf32, #tpu.memory_space<vmem>>, vector<1x1x1x8x9xf32>
    %77 = vector.shape_cast %76 : vector<1x1x1x8x9xf32> to vector<8x9xf32>
    %78 = vector.extract_strided_slice %73 {offsets = [0, 0], sizes = [4, 8], strides = [1, 1]} : vector<8x9xf32> to vector<4x8xf32>
    %c0_98 = arith.constant 0 : index
    %c24_99 = arith.constant 24 : index
    %79 = vector.load %arg9[%c0_98, %c24_99] : memref<36x64xf32, #tpu.memory_space<vmem>>, vector<4x8xf32>
    tpu.vector_store %arg9[%c0_98, %c24_99], %78 {strides = array<i32>} : memref<36x64xf32, #tpu.memory_space<vmem>>, vector<4x8xf32>,
    %80 = vector.extract_strided_slice %73 {offsets = [4, 0], sizes = [4, 8], strides = [1, 1]} : vector<8x9xf32> to vector<4x8xf32>
    %c4_100 = arith.constant 4 : index
    %c24_101 = arith.constant 24 : index
    %81 = vector.load %arg9[%c4_100, %c24_101] : memref<36x64xf32, #tpu.memory_space<vmem>>, vector<4x8xf32>
    tpu.vector_store %arg9[%c4_100, %c24_101], %80 {strides = array<i32>} : memref<36x64xf32, #tpu.memory_space<vmem>>, vector<4x8xf32>,
    %82 = vector.extract_strided_slice %73 {offsets = [0, 1], sizes = [4, 8], strides = [1, 1]} : vector<8x9xf32> to vector<4x8xf32>
    %c8_102 = arith.constant 8 : index
    %c24_103 = arith.constant 24 : index
    %83 = vector.load %arg9[%c8_102, %c24_103] : memref<36x64xf32, #tpu.memory_space<vmem>>, vector<4x8xf32>
    tpu.vector_store %arg9[%c8_102, %c24_103], %82 {strides = array<i32>} : memref<36x64xf32, #tpu.memory_space<vmem>>, vector<4x8xf32>,
    %84 = vector.extract_strided_slice %75 {offsets = [0, 0], sizes = [4, 8], strides = [1, 1]} : vector<8x9xf32> to vector<4x8xf32>
    %c12_104 = arith.constant 12 : index
    %c24_105 = arith.constant 24 : index
    %85 = vector.load %arg9[%c12_104, %c24_105] : memref<36x64xf32, #tpu.memory_space<vmem>>, vector<4x8xf32>
    tpu.vector_store %arg9[%c12_104, %c24_105], %84 {strides = array<i32>} : memref<36x64xf32, #tpu.memory_space<vmem>>, vector<4x8xf32>,
    %86 = vector.extract_strided_slice %75 {offsets = [4, 0], sizes = [4, 8], strides = [1, 1]} : vector<8x9xf32> to vector<4x8xf32>
    %c16_106 = arith.constant 16 : index
    %c24_107 = arith.constant 24 : index
    %87 = vector.load %arg9[%c16_106, %c24_107] : memref<36x64xf32, #tpu.memory_space<vmem>>, vector<4x8xf32>
    tpu.vector_store %arg9[%c16_106, %c24_107], %86 {strides = array<i32>} : memref<36x64xf32, #tpu.memory_space<vmem>>, vector<4x8xf32>,
    %88 = vector.extract_strided_slice %75 {offsets = [0, 1], sizes = [4, 8], strides = [1, 1]} : vector<8x9xf32> to vector<4x8xf32>
    %c20_108 = arith.constant 20 : index
    %c24_109 = arith.constant 24 : index
    %89 = vector.load %arg9[%c20_108, %c24_109] : memref<36x64xf32, #tpu.memory_space<vmem>>, vector<4x8xf32>
    tpu.vector_store %arg9[%c20_108, %c24_109], %88 {strides = array<i32>} : memref<36x64xf32, #tpu.memory_space<vmem>>, vector<4x8xf32>,
    %90 = vector.extract_strided_slice %77 {offsets = [0, 0], sizes = [4, 8], strides = [1, 1]} : vector<8x9xf32> to vector<4x8xf32>
    %c24_110 = arith.constant 24 : index
    %c24_111 = arith.constant 24 : index
    %91 = vector.load %arg9[%c24_110, %c24_111] : memref<36x64xf32, #tpu.memory_space<vmem>>, vector<4x8xf32>
    tpu.vector_store %arg9[%c24_110, %c24_111], %90 {strides = array<i32>} : memref<36x64xf32, #tpu.memory_space<vmem>>, vector<4x8xf32>,
    %92 = vector.extract_strided_slice %77 {offsets = [4, 0], sizes = [4, 8], strides = [1, 1]} : vector<8x9xf32> to vector<4x8xf32>
    %c28_112 = arith.constant 28 : index
    %c24_113 = arith.constant 24 : index
    %93 = vector.load %arg9[%c28_112, %c24_113] : memref<36x64xf32, #tpu.memory_space<vmem>>, vector<4x8xf32>
    tpu.vector_store %arg9[%c28_112, %c24_113], %92 {strides = array<i32>} : memref<36x64xf32, #tpu.memory_space<vmem>>, vector<4x8xf32>,
    %94 = vector.extract_strided_slice %77 {offsets = [0, 1], sizes = [4, 8], strides = [1, 1]} : vector<8x9xf32> to vector<4x8xf32>
    %c32_114 = arith.constant 32 : index
    %c24_115 = arith.constant 24 : index
    %95 = vector.load %arg9[%c32_114, %c24_115] : memref<36x64xf32, #tpu.memory_space<vmem>>, vector<4x8xf32>
    tpu.vector_store %arg9[%c32_114, %c24_115], %94 {strides = array<i32>} : memref<36x64xf32, #tpu.memory_space<vmem>>, vector<4x8xf32>,
    %c0_116 = arith.constant 0 : index
    %c0_117 = arith.constant 0 : index
    %c4_118 = arith.constant 4 : index
    %c0_119 = arith.constant 0 : index
    %c0_120 = arith.constant 0 : index
    %96 = vector.load %arg2[%c0_116, %c0_117, %c4_118, %c0_119, %c0_120] : memref<1x1x9x8x9xf32, #tpu.memory_space<vmem>>, vector<1x1x1x8x9xf32>
    %97 = vector.shape_cast %96 : vector<1x1x1x8x9xf32> to vector<8x9xf32>
    %c0_121 = arith.constant 0 : index
    %c4_122 = arith.constant 4 : index
    %c0_123 = arith.constant 0 : index
    %c0_124 = arith.constant 0 : index
    %98 = vector.load %arg3[%c0_121, %c4_122, %c0_123, %c0_124] : memref<1x8x8x9xf32, #tpu.memory_space<vmem>>, vector<1x1x8x9xf32>
    %99 = vector.shape_cast %98 : vector<1x1x8x9xf32> to vector<8x9xf32>
    %c0_125 = arith.constant 0 : index
    %c0_126 = arith.constant 0 : index
    %c5 = arith.constant 5 : index
    %c0_127 = arith.constant 0 : index
    %c0_128 = arith.constant 0 : index
    %100 = vector.load %arg2[%c0_125, %c0_126, %c5, %c0_127, %c0_128] : memref<1x1x9x8x9xf32, #tpu.memory_space<vmem>>, vector<1x1x1x8x9xf32>
    %101 = vector.shape_cast %100 : vector<1x1x1x8x9xf32> to vector<8x9xf32>
    %102 = vector.extract_strided_slice %97 {offsets = [0, 0], sizes = [4, 8], strides = [1, 1]} : vector<8x9xf32> to vector<4x8xf32>
    %c0_129 = arith.constant 0 : index
    %c32_130 = arith.constant 32 : index
    %103 = vector.load %arg9[%c0_129, %c32_130] : memref<36x64xf32, #tpu.memory_space<vmem>>, vector<4x8xf32>
    tpu.vector_store %arg9[%c0_129, %c32_130], %102 {strides = array<i32>} : memref<36x64xf32, #tpu.memory_space<vmem>>, vector<4x8xf32>,
    %104 = vector.extract_strided_slice %97 {offsets = [4, 0], sizes = [4, 8], strides = [1, 1]} : vector<8x9xf32> to vector<4x8xf32>
    %c4_131 = arith.constant 4 : index
    %c32_132 = arith.constant 32 : index
    %105 = vector.load %arg9[%c4_131, %c32_132] : memref<36x64xf32, #tpu.memory_space<vmem>>, vector<4x8xf32>
    tpu.vector_store %arg9[%c4_131, %c32_132], %104 {strides = array<i32>} : memref<36x64xf32, #tpu.memory_space<vmem>>, vector<4x8xf32>,
    %106 = vector.extract_strided_slice %97 {offsets = [0, 1], sizes = [4, 8], strides = [1, 1]} : vector<8x9xf32> to vector<4x8xf32>
    %c8_133 = arith.constant 8 : index
    %c32_134 = arith.constant 32 : index
    %107 = vector.load %arg9[%c8_133, %c32_134] : memref<36x64xf32, #tpu.memory_space<vmem>>, vector<4x8xf32>
    tpu.vector_store %arg9[%c8_133, %c32_134], %106 {strides = array<i32>} : memref<36x64xf32, #tpu.memory_space<vmem>>, vector<4x8xf32>,
    %108 = vector.extract_strided_slice %99 {offsets = [0, 0], sizes = [4, 8], strides = [1, 1]} : vector<8x9xf32> to vector<4x8xf32>
    %c12_135 = arith.constant 12 : index
    %c32_136 = arith.constant 32 : index
    %109 = vector.load %arg9[%c12_135, %c32_136] : memref<36x64xf32, #tpu.memory_space<vmem>>, vector<4x8xf32>
    tpu.vector_store %arg9[%c12_135, %c32_136], %108 {strides = array<i32>} : memref<36x64xf32, #tpu.memory_space<vmem>>, vector<4x8xf32>,
    %110 = vector.extract_strided_slice %99 {offsets = [4, 0], sizes = [4, 8], strides = [1, 1]} : vector<8x9xf32> to vector<4x8xf32>
    %c16_137 = arith.constant 16 : index
    %c32_138 = arith.constant 32 : index
    %111 = vector.load %arg9[%c16_137, %c32_138] : memref<36x64xf32, #tpu.memory_space<vmem>>, vector<4x8xf32>
    tpu.vector_store %arg9[%c16_137, %c32_138], %110 {strides = array<i32>} : memref<36x64xf32, #tpu.memory_space<vmem>>, vector<4x8xf32>,
    %112 = vector.extract_strided_slice %99 {offsets = [0, 1], sizes = [4, 8], strides = [1, 1]} : vector<8x9xf32> to vector<4x8xf32>
    %c20_139 = arith.constant 20 : index
    %c32_140 = arith.constant 32 : index
    %113 = vector.load %arg9[%c20_139, %c32_140] : memref<36x64xf32, #tpu.memory_space<vmem>>, vector<4x8xf32>
    tpu.vector_store %arg9[%c20_139, %c32_140], %112 {strides = array<i32>} : memref<36x64xf32, #tpu.memory_space<vmem>>, vector<4x8xf32>,
    %114 = vector.extract_strided_slice %101 {offsets = [0, 0], sizes = [4, 8], strides = [1, 1]} : vector<8x9xf32> to vector<4x8xf32>
    %c24_141 = arith.constant 24 : index
    %c32_142 = arith.constant 32 : index
    %115 = vector.load %arg9[%c24_141, %c32_142] : memref<36x64xf32, #tpu.memory_space<vmem>>, vector<4x8xf32>
    tpu.vector_store %arg9[%c24_141, %c32_142], %114 {strides = array<i32>} : memref<36x64xf32, #tpu.memory_space<vmem>>, vector<4x8xf32>,
    %116 = vector.extract_strided_slice %101 {offsets = [4, 0], sizes = [4, 8], strides = [1, 1]} : vector<8x9xf32> to vector<4x8xf32>
    %c28_143 = arith.constant 28 : index
    %c32_144 = arith.constant 32 : index
    %117 = vector.load %arg9[%c28_143, %c32_144] : memref<36x64xf32, #tpu.memory_space<vmem>>, vector<4x8xf32>
    tpu.vector_store %arg9[%c28_143, %c32_144], %116 {strides = array<i32>} : memref<36x64xf32, #tpu.memory_space<vmem>>, vector<4x8xf32>,
    %118 = vector.extract_strided_slice %101 {offsets = [0, 1], sizes = [4, 8], strides = [1, 1]} : vector<8x9xf32> to vector<4x8xf32>
    %c32_145 = arith.constant 32 : index
    %c32_146 = arith.constant 32 : index
    %119 = vector.load %arg9[%c32_145, %c32_146] : memref<36x64xf32, #tpu.memory_space<vmem>>, vector<4x8xf32>
    tpu.vector_store %arg9[%c32_145, %c32_146], %118 {strides = array<i32>} : memref<36x64xf32, #tpu.memory_space<vmem>>, vector<4x8xf32>,
    %c0_147 = arith.constant 0 : index
    %c0_148 = arith.constant 0 : index
    %c5_149 = arith.constant 5 : index
    %c0_150 = arith.constant 0 : index
    %c0_151 = arith.constant 0 : index
    %120 = vector.load %arg2[%c0_147, %c0_148, %c5_149, %c0_150, %c0_151] : memref<1x1x9x8x9xf32, #tpu.memory_space<vmem>>, vector<1x1x1x8x9xf32>
    %121 = vector.shape_cast %120 : vector<1x1x1x8x9xf32> to vector<8x9xf32>
    %c0_152 = arith.constant 0 : index
    %c5_153 = arith.constant 5 : index
    %c0_154 = arith.constant 0 : index
    %c0_155 = arith.constant 0 : index
    %122 = vector.load %arg3[%c0_152, %c5_153, %c0_154, %c0_155] : memref<1x8x8x9xf32, #tpu.memory_space<vmem>>, vector<1x1x8x9xf32>
    %123 = vector.shape_cast %122 : vector<1x1x8x9xf32> to vector<8x9xf32>
    %c0_156 = arith.constant 0 : index
    %c0_157 = arith.constant 0 : index
    %c6 = arith.constant 6 : index
    %c0_158 = arith.constant 0 : index
    %c0_159 = arith.constant 0 : index
    %124 = vector.load %arg2[%c0_156, %c0_157, %c6, %c0_158, %c0_159] : memref<1x1x9x8x9xf32, #tpu.memory_space<vmem>>, vector<1x1x1x8x9xf32>
    %125 = vector.shape_cast %124 : vector<1x1x1x8x9xf32> to vector<8x9xf32>
    %126 = vector.extract_strided_slice %121 {offsets = [0, 0], sizes = [4, 8], strides = [1, 1]} : vector<8x9xf32> to vector<4x8xf32>
    %c0_160 = arith.constant 0 : index
    %c40 = arith.constant 40 : index
    %127 = vector.load %arg9[%c0_160, %c40] : memref<36x64xf32, #tpu.memory_space<vmem>>, vector<4x8xf32>
    tpu.vector_store %arg9[%c0_160, %c40], %126 {strides = array<i32>} : memref<36x64xf32, #tpu.memory_space<vmem>>, vector<4x8xf32>,
    %128 = vector.extract_strided_slice %121 {offsets = [4, 0], sizes = [4, 8], strides = [1, 1]} : vector<8x9xf32> to vector<4x8xf32>
    %c4_161 = arith.constant 4 : index
    %c40_162 = arith.constant 40 : index
    %129 = vector.load %arg9[%c4_161, %c40_162] : memref<36x64xf32, #tpu.memory_space<vmem>>, vector<4x8xf32>
    tpu.vector_store %arg9[%c4_161, %c40_162], %128 {strides = array<i32>} : memref<36x64xf32, #tpu.memory_space<vmem>>, vector<4x8xf32>,
    %130 = vector.extract_strided_slice %121 {offsets = [0, 1], sizes = [4, 8], strides = [1, 1]} : vector<8x9xf32> to vector<4x8xf32>
    %c8_163 = arith.constant 8 : index
    %c40_164 = arith.constant 40 : index
    %131 = vector.load %arg9[%c8_163, %c40_164] : memref<36x64xf32, #tpu.memory_space<vmem>>, vector<4x8xf32>
    tpu.vector_store %arg9[%c8_163, %c40_164], %130 {strides = array<i32>} : memref<36x64xf32, #tpu.memory_space<vmem>>, vector<4x8xf32>,
    %132 = vector.extract_strided_slice %123 {offsets = [0, 0], sizes = [4, 8], strides = [1, 1]} : vector<8x9xf32> to vector<4x8xf32>
    %c12_165 = arith.constant 12 : index
    %c40_166 = arith.constant 40 : index
    %133 = vector.load %arg9[%c12_165, %c40_166] : memref<36x64xf32, #tpu.memory_space<vmem>>, vector<4x8xf32>
    tpu.vector_store %arg9[%c12_165, %c40_166], %132 {strides = array<i32>} : memref<36x64xf32, #tpu.memory_space<vmem>>, vector<4x8xf32>,
    %134 = vector.extract_strided_slice %123 {offsets = [4, 0], sizes = [4, 8], strides = [1, 1]} : vector<8x9xf32> to vector<4x8xf32>
    %c16_167 = arith.constant 16 : index
    %c40_168 = arith.constant 40 : index
    %135 = vector.load %arg9[%c16_167, %c40_168] : memref<36x64xf32, #tpu.memory_space<vmem>>, vector<4x8xf32>
    tpu.vector_store %arg9[%c16_167, %c40_168], %134 {strides = array<i32>} : memref<36x64xf32, #tpu.memory_space<vmem>>, vector<4x8xf32>,
    %136 = vector.extract_strided_slice %123 {offsets = [0, 1], sizes = [4, 8], strides = [1, 1]} : vector<8x9xf32> to vector<4x8xf32>
    %c20_169 = arith.constant 20 : index
    %c40_170 = arith.constant 40 : index
    %137 = vector.load %arg9[%c20_169, %c40_170] : memref<36x64xf32, #tpu.memory_space<vmem>>, vector<4x8xf32>
    tpu.vector_store %arg9[%c20_169, %c40_170], %136 {strides = array<i32>} : memref<36x64xf32, #tpu.memory_space<vmem>>, vector<4x8xf32>,
    %138 = vector.extract_strided_slice %125 {offsets = [0, 0], sizes = [4, 8], strides = [1, 1]} : vector<8x9xf32> to vector<4x8xf32>
    %c24_171 = arith.constant 24 : index
    %c40_172 = arith.constant 40 : index
    %139 = vector.load %arg9[%c24_171, %c40_172] : memref<36x64xf32, #tpu.memory_space<vmem>>, vector<4x8xf32>
    tpu.vector_store %arg9[%c24_171, %c40_172], %138 {strides = array<i32>} : memref<36x64xf32, #tpu.memory_space<vmem>>, vector<4x8xf32>,
    %140 = vector.extract_strided_slice %125 {offsets = [4, 0], sizes = [4, 8], strides = [1, 1]} : vector<8x9xf32> to vector<4x8xf32>
    %c28_173 = arith.constant 28 : index
    %c40_174 = arith.constant 40 : index
    %141 = vector.load %arg9[%c28_173, %c40_174] : memref<36x64xf32, #tpu.memory_space<vmem>>, vector<4x8xf32>
    tpu.vector_store %arg9[%c28_173, %c40_174], %140 {strides = array<i32>} : memref<36x64xf32, #tpu.memory_space<vmem>>, vector<4x8xf32>,
    %142 = vector.extract_strided_slice %125 {offsets = [0, 1], sizes = [4, 8], strides = [1, 1]} : vector<8x9xf32> to vector<4x8xf32>
    %c32_175 = arith.constant 32 : index
    %c40_176 = arith.constant 40 : index
    %143 = vector.load %arg9[%c32_175, %c40_176] : memref<36x64xf32, #tpu.memory_space<vmem>>, vector<4x8xf32>
    tpu.vector_store %arg9[%c32_175, %c40_176], %142 {strides = array<i32>} : memref<36x64xf32, #tpu.memory_space<vmem>>, vector<4x8xf32>,
    %c0_177 = arith.constant 0 : index
    %c0_178 = arith.constant 0 : index
    %c6_179 = arith.constant 6 : index
    %c0_180 = arith.constant 0 : index
    %c0_181 = arith.constant 0 : index
    %144 = vector.load %arg2[%c0_177, %c0_178, %c6_179, %c0_180, %c0_181] : memref<1x1x9x8x9xf32, #tpu.memory_space<vmem>>, vector<1x1x1x8x9xf32>
    %145 = vector.shape_cast %144 : vector<1x1x1x8x9xf32> to vector<8x9xf32>
    %c0_182 = arith.constant 0 : index
    %c6_183 = arith.constant 6 : index
    %c0_184 = arith.constant 0 : index
    %c0_185 = arith.constant 0 : index
    %146 = vector.load %arg3[%c0_182, %c6_183, %c0_184, %c0_185] : memref<1x8x8x9xf32, #tpu.memory_space<vmem>>, vector<1x1x8x9xf32>
    %147 = vector.shape_cast %146 : vector<1x1x8x9xf32> to vector<8x9xf32>
    %c0_186 = arith.constant 0 : index
    %c0_187 = arith.constant 0 : index
    %c7 = arith.constant 7 : index
    %c0_188 = arith.constant 0 : index
    %c0_189 = arith.constant 0 : index
    %148 = vector.load %arg2[%c0_186, %c0_187, %c7, %c0_188, %c0_189] : memref<1x1x9x8x9xf32, #tpu.memory_space<vmem>>, vector<1x1x1x8x9xf32>
    %149 = vector.shape_cast %148 : vector<1x1x1x8x9xf32> to vector<8x9xf32>
    %150 = vector.extract_strided_slice %145 {offsets = [0, 0], sizes = [4, 8], strides = [1, 1]} : vector<8x9xf32> to vector<4x8xf32>
    %c0_190 = arith.constant 0 : index
    %c48 = arith.constant 48 : index
    %151 = vector.load %arg9[%c0_190, %c48] : memref<36x64xf32, #tpu.memory_space<vmem>>, vector<4x8xf32>
    tpu.vector_store %arg9[%c0_190, %c48], %150 {strides = array<i32>} : memref<36x64xf32, #tpu.memory_space<vmem>>, vector<4x8xf32>,
    %152 = vector.extract_strided_slice %145 {offsets = [4, 0], sizes = [4, 8], strides = [1, 1]} : vector<8x9xf32> to vector<4x8xf32>
    %c4_191 = arith.constant 4 : index
    %c48_192 = arith.constant 48 : index
    %153 = vector.load %arg9[%c4_191, %c48_192] : memref<36x64xf32, #tpu.memory_space<vmem>>, vector<4x8xf32>
    tpu.vector_store %arg9[%c4_191, %c48_192], %152 {strides = array<i32>} : memref<36x64xf32, #tpu.memory_space<vmem>>, vector<4x8xf32>,
    %154 = vector.extract_strided_slice %145 {offsets = [0, 1], sizes = [4, 8], strides = [1, 1]} : vector<8x9xf32> to vector<4x8xf32>
    %c8_193 = arith.constant 8 : index
    %c48_194 = arith.constant 48 : index
    %155 = vector.load %arg9[%c8_193, %c48_194] : memref<36x64xf32, #tpu.memory_space<vmem>>, vector<4x8xf32>
    tpu.vector_store %arg9[%c8_193, %c48_194], %154 {strides = array<i32>} : memref<36x64xf32, #tpu.memory_space<vmem>>, vector<4x8xf32>,
    %156 = vector.extract_strided_slice %147 {offsets = [0, 0], sizes = [4, 8], strides = [1, 1]} : vector<8x9xf32> to vector<4x8xf32>
    %c12_195 = arith.constant 12 : index
    %c48_196 = arith.constant 48 : index
    %157 = vector.load %arg9[%c12_195, %c48_196] : memref<36x64xf32, #tpu.memory_space<vmem>>, vector<4x8xf32>
    tpu.vector_store %arg9[%c12_195, %c48_196], %156 {strides = array<i32>} : memref<36x64xf32, #tpu.memory_space<vmem>>, vector<4x8xf32>,
    %158 = vector.extract_strided_slice %147 {offsets = [4, 0], sizes = [4, 8], strides = [1, 1]} : vector<8x9xf32> to vector<4x8xf32>
    %c16_197 = arith.constant 16 : index
    %c48_198 = arith.constant 48 : index
    %159 = vector.load %arg9[%c16_197, %c48_198] : memref<36x64xf32, #tpu.memory_space<vmem>>, vector<4x8xf32>
    tpu.vector_store %arg9[%c16_197, %c48_198], %158 {strides = array<i32>} : memref<36x64xf32, #tpu.memory_space<vmem>>, vector<4x8xf32>,
    %160 = vector.extract_strided_slice %147 {offsets = [0, 1], sizes = [4, 8], strides = [1, 1]} : vector<8x9xf32> to vector<4x8xf32>
    %c20_199 = arith.constant 20 : index
    %c48_200 = arith.constant 48 : index
    %161 = vector.load %arg9[%c20_199, %c48_200] : memref<36x64xf32, #tpu.memory_space<vmem>>, vector<4x8xf32>
    tpu.vector_store %arg9[%c20_199, %c48_200], %160 {strides = array<i32>} : memref<36x64xf32, #tpu.memory_space<vmem>>, vector<4x8xf32>,
    %162 = vector.extract_strided_slice %149 {offsets = [0, 0], sizes = [4, 8], strides = [1, 1]} : vector<8x9xf32> to vector<4x8xf32>
    %c24_201 = arith.constant 24 : index
    %c48_202 = arith.constant 48 : index
    %163 = vector.load %arg9[%c24_201, %c48_202] : memref<36x64xf32, #tpu.memory_space<vmem>>, vector<4x8xf32>
    tpu.vector_store %arg9[%c24_201, %c48_202], %162 {strides = array<i32>} : memref<36x64xf32, #tpu.memory_space<vmem>>, vector<4x8xf32>,
    %164 = vector.extract_strided_slice %149 {offsets = [4, 0], sizes = [4, 8], strides = [1, 1]} : vector<8x9xf32> to vector<4x8xf32>
    %c28_203 = arith.constant 28 : index
    %c48_204 = arith.constant 48 : index
    %165 = vector.load %arg9[%c28_203, %c48_204] : memref<36x64xf32, #tpu.memory_space<vmem>>, vector<4x8xf32>
    tpu.vector_store %arg9[%c28_203, %c48_204], %164 {strides = array<i32>} : memref<36x64xf32, #tpu.memory_space<vmem>>, vector<4x8xf32>,
    %166 = vector.extract_strided_slice %149 {offsets = [0, 1], sizes = [4, 8], strides = [1, 1]} : vector<8x9xf32> to vector<4x8xf32>
    %c32_205 = arith.constant 32 : index
    %c48_206 = arith.constant 48 : index
    %167 = vector.load %arg9[%c32_205, %c48_206] : memref<36x64xf32, #tpu.memory_space<vmem>>, vector<4x8xf32>
    tpu.vector_store %arg9[%c32_205, %c48_206], %166 {strides = array<i32>} : memref<36x64xf32, #tpu.memory_space<vmem>>, vector<4x8xf32>,
    %c0_207 = arith.constant 0 : index
    %c0_208 = arith.constant 0 : index
    %c7_209 = arith.constant 7 : index
    %c0_210 = arith.constant 0 : index
    %c0_211 = arith.constant 0 : index
    %168 = vector.load %arg2[%c0_207, %c0_208, %c7_209, %c0_210, %c0_211] : memref<1x1x9x8x9xf32, #tpu.memory_space<vmem>>, vector<1x1x1x8x9xf32>
    %169 = vector.shape_cast %168 : vector<1x1x1x8x9xf32> to vector<8x9xf32>
    %c0_212 = arith.constant 0 : index
    %c7_213 = arith.constant 7 : index
    %c0_214 = arith.constant 0 : index
    %c0_215 = arith.constant 0 : index
    %170 = vector.load %arg3[%c0_212, %c7_213, %c0_214, %c0_215] : memref<1x8x8x9xf32, #tpu.memory_space<vmem>>, vector<1x1x8x9xf32>
    %171 = vector.shape_cast %170 : vector<1x1x8x9xf32> to vector<8x9xf32>
    %c0_216 = arith.constant 0 : index
    %c0_217 = arith.constant 0 : index
    %c8_218 = arith.constant 8 : index
    %c0_219 = arith.constant 0 : index
    %c0_220 = arith.constant 0 : index
    %172 = vector.load %arg2[%c0_216, %c0_217, %c8_218, %c0_219, %c0_220] : memref<1x1x9x8x9xf32, #tpu.memory_space<vmem>>, vector<1x1x1x8x9xf32>
    %173 = vector.shape_cast %172 : vector<1x1x1x8x9xf32> to vector<8x9xf32>
    %174 = vector.extract_strided_slice %169 {offsets = [0, 0], sizes = [4, 8], strides = [1, 1]} : vector<8x9xf32> to vector<4x8xf32>
    %c0_221 = arith.constant 0 : index
    %c56 = arith.constant 56 : index
    %175 = vector.load %arg9[%c0_221, %c56] : memref<36x64xf32, #tpu.memory_space<vmem>>, vector<4x8xf32>
    tpu.vector_store %arg9[%c0_221, %c56], %174 {strides = array<i32>} : memref<36x64xf32, #tpu.memory_space<vmem>>, vector<4x8xf32>,
    %176 = vector.extract_strided_slice %169 {offsets = [4, 0], sizes = [4, 8], strides = [1, 1]} : vector<8x9xf32> to vector<4x8xf32>
    %c4_222 = arith.constant 4 : index
    %c56_223 = arith.constant 56 : index
    %177 = vector.load %arg9[%c4_222, %c56_223] : memref<36x64xf32, #tpu.memory_space<vmem>>, vector<4x8xf32>
    tpu.vector_store %arg9[%c4_222, %c56_223], %176 {strides = array<i32>} : memref<36x64xf32, #tpu.memory_space<vmem>>, vector<4x8xf32>,
    %178 = vector.extract_strided_slice %169 {offsets = [0, 1], sizes = [4, 8], strides = [1, 1]} : vector<8x9xf32> to vector<4x8xf32>
    %c8_224 = arith.constant 8 : index
    %c56_225 = arith.constant 56 : index
    %179 = vector.load %arg9[%c8_224, %c56_225] : memref<36x64xf32, #tpu.memory_space<vmem>>, vector<4x8xf32>
    tpu.vector_store %arg9[%c8_224, %c56_225], %178 {strides = array<i32>} : memref<36x64xf32, #tpu.memory_space<vmem>>, vector<4x8xf32>,
    %180 = vector.extract_strided_slice %171 {offsets = [0, 0], sizes = [4, 8], strides = [1, 1]} : vector<8x9xf32> to vector<4x8xf32>
    %c12_226 = arith.constant 12 : index
    %c56_227 = arith.constant 56 : index
    %181 = vector.load %arg9[%c12_226, %c56_227] : memref<36x64xf32, #tpu.memory_space<vmem>>, vector<4x8xf32>
    tpu.vector_store %arg9[%c12_226, %c56_227], %180 {strides = array<i32>} : memref<36x64xf32, #tpu.memory_space<vmem>>, vector<4x8xf32>,
    %182 = vector.extract_strided_slice %171 {offsets = [4, 0], sizes = [4, 8], strides = [1, 1]} : vector<8x9xf32> to vector<4x8xf32>
    %c16_228 = arith.constant 16 : index
    %c56_229 = arith.constant 56 : index
    %183 = vector.load %arg9[%c16_228, %c56_229] : memref<36x64xf32, #tpu.memory_space<vmem>>, vector<4x8xf32>
    tpu.vector_store %arg9[%c16_228, %c56_229], %182 {strides = array<i32>} : memref<36x64xf32, #tpu.memory_space<vmem>>, vector<4x8xf32>,
    %184 = vector.extract_strided_slice %171 {offsets = [0, 1], sizes = [4, 8], strides = [1, 1]} : vector<8x9xf32> to vector<4x8xf32>
    %c20_230 = arith.constant 20 : index
    %c56_231 = arith.constant 56 : index
    %185 = vector.load %arg9[%c20_230, %c56_231] : memref<36x64xf32, #tpu.memory_space<vmem>>, vector<4x8xf32>
    tpu.vector_store %arg9[%c20_230, %c56_231], %184 {strides = array<i32>} : memref<36x64xf32, #tpu.memory_space<vmem>>, vector<4x8xf32>,
    %186 = vector.extract_strided_slice %173 {offsets = [0, 0], sizes = [4, 8], strides = [1, 1]} : vector<8x9xf32> to vector<4x8xf32>
    %c24_232 = arith.constant 24 : index
    %c56_233 = arith.constant 56 : index
    %187 = vector.load %arg9[%c24_232, %c56_233] : memref<36x64xf32, #tpu.memory_space<vmem>>, vector<4x8xf32>
    tpu.vector_store %arg9[%c24_232, %c56_233], %186 {strides = array<i32>} : memref<36x64xf32, #tpu.memory_space<vmem>>, vector<4x8xf32>,
    %188 = vector.extract_strided_slice %173 {offsets = [4, 0], sizes = [4, 8], strides = [1, 1]} : vector<8x9xf32> to vector<4x8xf32>
    %c28_234 = arith.constant 28 : index
    %c56_235 = arith.constant 56 : index
    %189 = vector.load %arg9[%c28_234, %c56_235] : memref<36x64xf32, #tpu.memory_space<vmem>>, vector<4x8xf32>
    tpu.vector_store %arg9[%c28_234, %c56_235], %188 {strides = array<i32>} : memref<36x64xf32, #tpu.memory_space<vmem>>, vector<4x8xf32>,
    %190 = vector.extract_strided_slice %173 {offsets = [0, 1], sizes = [4, 8], strides = [1, 1]} : vector<8x9xf32> to vector<4x8xf32>
    %c32_236 = arith.constant 32 : index
    %c56_237 = arith.constant 56 : index
    %191 = vector.load %arg9[%c32_236, %c56_237] : memref<36x64xf32, #tpu.memory_space<vmem>>, vector<4x8xf32>
    tpu.vector_store %arg9[%c32_236, %c56_237], %190 {strides = array<i32>} : memref<36x64xf32, #tpu.memory_space<vmem>>, vector<4x8xf32>,
    %c0_238 = arith.constant 0 : index
    %c0_239 = arith.constant 0 : index
    %192 = vector.load %arg4[%c0_238, %c0_239] : memref<12x36xf32, #tpu.memory_space<vmem>>, vector<12x36xf32>
    %c0_240 = arith.constant 0 : index
    %c0_241 = arith.constant 0 : index
    %193 = vector.load %arg9[%c0_240, %c0_241] : memref<36x64xf32, #tpu.memory_space<vmem>>, vector<36x64xf32>
    %cst = arith.constant dense<0.000000e+00> : vector<12x64xf32>
    %194 = tpu.matmul %192, %193, %cst {dimension_numbers = #tpu.dot_dimension_numbers<[1], [0], [0], [1], [0, 0, 1, 1], [], []>} : vector<12x36xf32>, vector<36x64xf32>, vector<12x64xf32> -> vector<12x64xf32>
    %c0_242 = arith.constant 0 : index
    %c0_243 = arith.constant 0 : index
    %195 = vector.load %arg5[%c0_242, %c0_243] : memref<12x1xf32, #tpu.memory_space<vmem>>, vector<12x1xf32>
    %196 = vector.broadcast %195 : vector<12x1xf32> to vector<12x64xf32>
    %197 = arith.addf %194, %196 : vector<12x64xf32>
    %c16_244 = arith.constant 16 : index
    %c0_245 = arith.constant 0 : index
    %198 = vector.load %arg9[%c16_244, %c0_245] : memref<36x64xf32, #tpu.memory_space<vmem>>, vector<4x64xf32>
    %c20_246 = arith.constant 20 : index
    %c0_247 = arith.constant 0 : index
    %199 = vector.load %arg9[%c20_246, %c0_247] : memref<36x64xf32, #tpu.memory_space<vmem>>, vector<4x64xf32>
    %200 = arith.maximumf %198, %199 : vector<4x64xf32>
    %c28_248 = arith.constant 28 : index
    %c0_249 = arith.constant 0 : index
    %201 = vector.load %arg9[%c28_248, %c0_249] : memref<36x64xf32, #tpu.memory_space<vmem>>, vector<4x64xf32>
    %c32_250 = arith.constant 32 : index
    %c0_251 = arith.constant 0 : index
    %202 = vector.load %arg9[%c32_250, %c0_251] : memref<36x64xf32, #tpu.memory_space<vmem>>, vector<4x64xf32>
    %203 = arith.maximumf %201, %202 : vector<4x64xf32>
    %204 = arith.maximumf %200, %203 : vector<4x64xf32>
    %c0_252 = arith.constant 0 : index
    %c0_253 = arith.constant 0 : index
    %205 = vector.load %arg6[%c0_252, %c0_253] : memref<4x1xf32, #tpu.memory_space<vmem>>, vector<4x1xf32>
    %206 = vector.broadcast %205 : vector<4x1xf32> to vector<4x64xf32>
    %207 = arith.mulf %204, %206 : vector<4x64xf32>
    %c0_254 = arith.constant 0 : index
    %c0_255 = arith.constant 0 : index
    %208 = vector.load %arg7[%c0_254, %c0_255] : memref<4x1xf32, #tpu.memory_space<vmem>>, vector<4x1xf32>
    %209 = vector.broadcast %208 : vector<4x1xf32> to vector<4x64xf32>
    %210 = arith.addf %207, %209 : vector<4x64xf32>
    %cst_256 = arith.constant 0.000000e+00 : f32
    %211 = vector.broadcast %cst_256 : f32 to vector<12x64xf32>
    %212 = arith.maximumf %197, %211 : vector<12x64xf32>
    %c0_257 = arith.constant 0 : index
    %c0_258 = arith.constant 0 : index
    %c0_259 = arith.constant 0 : index
    %213 = vector.load %arg8[%c0_257, %c0_258, %c0_259] : memref<1x16x64xf32, #tpu.memory_space<vmem>>, vector<1x12x64xf32>
    %214 = vector.shape_cast %213 : vector<1x12x64xf32> to vector<12x64xf32>
    %215 = vector.shape_cast %212 : vector<12x64xf32> to vector<1x12x64xf32>
    tpu.vector_store %arg8[%c0_257, %c0_258, %c0_259], %215 {strides = array<i32>} : memref<1x16x64xf32, #tpu.memory_space<vmem>>, vector<1x12x64xf32>,
    %cst_260 = arith.constant 0.000000e+00 : f32
    %216 = vector.broadcast %cst_260 : f32 to vector<4x64xf32>
    %217 = arith.maximumf %210, %216 : vector<4x64xf32>
    %c0_261 = arith.constant 0 : index
    %c12_262 = arith.constant 12 : index
    %c0_263 = arith.constant 0 : index
    %218 = vector.load %arg8[%c0_261, %c12_262, %c0_263] : memref<1x16x64xf32, #tpu.memory_space<vmem>>, vector<1x4x64xf32>
    %219 = vector.shape_cast %218 : vector<1x4x64xf32> to vector<4x64xf32>
    %220 = vector.shape_cast %217 : vector<4x64xf32> to vector<1x4x64xf32>
    tpu.vector_store %arg8[%c0_261, %c12_262, %c0_263], %220 {strides = array<i32>} : memref<1x16x64xf32, #tpu.memory_space<vmem>>, vector<1x4x64xf32>,
    return
  }
  func.func @transform_0(%arg0: i32, %arg1: i32) -> (i32, i32, i32, i32, i32) {
    %c0_i32 = arith.constant 0 : i32
    %c0_i32_0 = arith.constant 0 : i32
    %c0_i32_1 = arith.constant 0 : i32
    %c0_i32_2 = arith.constant 0 : i32
    return %arg0, %arg1, %c0_i32, %c0_i32_0, %c0_i32_1 : i32, i32, i32, i32, i32
  }
  func.func @transform_1(%arg0: i32, %arg1: i32) -> (i32, i32, i32, i32) {
    %c0_i32 = arith.constant 0 : i32
    %c0_i32_0 = arith.constant 0 : i32
    %c0_i32_1 = arith.constant 0 : i32
    return %arg0, %arg1, %c0_i32, %c0_i32_0 : i32, i32, i32, i32
  }
  func.func @transform_2(%arg0: i32, %arg1: i32) -> (i32, i32) {
    %c0_i32 = arith.constant 0 : i32
    %c0_i32_0 = arith.constant 0 : i32
    %c0_i32_1 = arith.constant 0 : i32
    return %c0_i32, %c0_i32_0 : i32, i32
  }
  func.func @transform_3(%arg0: i32, %arg1: i32) -> (i32, i32) {
    %c0_i32 = arith.constant 0 : i32
    %c0_i32_0 = arith.constant 0 : i32
    %c0_i32_1 = arith.constant 0 : i32
    return %c0_i32, %c0_i32_0 : i32, i32
  }
  func.func @transform_4(%arg0: i32, %arg1: i32) -> (i32, i32) {
    %c0_i32 = arith.constant 0 : i32
    %c0_i32_0 = arith.constant 0 : i32
    %c0_i32_1 = arith.constant 0 : i32
    return %c0_i32, %c0_i32_0 : i32, i32
  }
  func.func @transform_5(%arg0: i32, %arg1: i32) -> (i32, i32) {
    %c0_i32 = arith.constant 0 : i32
    %c0_i32_0 = arith.constant 0 : i32
    %c0_i32_1 = arith.constant 0 : i32
    return %c0_i32, %c0_i32_0 : i32, i32
  }
  func.func @transform_6(%arg0: i32, %arg1: i32) -> (i32, i32, i32) {
    %c0_i32 = arith.constant 0 : i32
    %c0_i32_0 = arith.constant 0 : i32
    return %arg0, %c0_i32, %arg1 : i32, i32, i32
  }
}

</mosaic_0001>

<llo_original>
// kernel: downsampler_block.1
$region0: #{downsampler_block.1}
  #allocation0 [shape = 'u32[]', space=smem, size = 0x4, offset = 0x4, fixed_abs, tag = 'smem constant byte address 0x4 - core index']
  #allocation1 [shape = 'u32[72,128]{1,0:T(1,128)}', space=vmem, size = 0x9000, scoped, tag = 'internal scratch']
  #allocation2 [shape = 'f32[36,64]{1,0:T(8,128)}', space=vmem, size = 0x5000, scoped, tag = 'scratch operand']
  %s0 = inlined_call_operand.vmem [shape: f32[2,1,9,8,9], index: 0, kind: input, shape index: {}]
  %s1 = inlined_call_operand.vmem [shape: f32[2,8,8,9], index: 1, kind: input, shape index: {}]
  %s2 = inlined_call_operand.vmem [shape: f32[12,36], index: 2, kind: input, shape index: {}]
  %s3 = inlined_call_operand.vmem [shape: f32[12,1], index: 3, kind: input, shape index: {}]
  %s4 = inlined_call_operand.vmem [shape: f32[4,1], index: 4, kind: input, shape index: {}]
  %s5 = inlined_call_operand.vmem [shape: f32[4,1], index: 5, kind: input, shape index: {}]
  %s6 = inlined_call_operand.vmem [shape: f32[2,16,64], index: 6, kind: output, shape index: {}]
  %s7 = sld [smem:[#allocation0]]
  $region57: #{downsampler_block.1} parent=0
    _
  %s9 = ssub.s32 1, %s7
  %s10 = scalar_select 0, %s9, %s7
  loop: start=0, step=1, limit=4
  $region2: #{downsampler_block.1} parent=0 // loop_pre_header
    _
  $region3: #{downsampler_block.1} parent=0 // loop_header
    %s12 = sphi 0, %s16
    %p13 = scmp.ge.s32.totalorder %s12, 4
    %s19 = sphi 0, %s31
    %s20 = sphi 0, %s27
    %s21 = sphi 0, %s19
    %s22 = sphi 0, %s20
    %s23 = sphi 0, %s21
    %s24 = sphi 0, %s22
    %s36 = sphi 0, %s38
    %s39 = sphi 0, %s36
    %s40 = sphi 0, %s39
    %s56 = sphi 0, %s40
    %s64 = sphi 0, %s66
    %s67 = sphi 0, %s64
    %s68 = sphi 0, %s67
    %s84 = sphi 0, %s68
    %s88 = sphi 0, %s88
    %s90 = sphi 0, %s88
    %s91 = sphi 0, %s90
    %s105 = sphi 0, %s91
    %s109 = sphi 0, %s109
    %s111 = sphi 0, %s109
    %s112 = sphi 0, %s111
    %s126 = sphi 0, %s112
    %s130 = sphi 0, %s130
    %s132 = sphi 0, %s130
    %s133 = sphi 0, %s132
    %s147 = sphi 0, %s133
    %s151 = sphi 0, %s151
    %s153 = sphi 0, %s151
    %s154 = sphi 0, %s153
    %s168 = sphi 0, %s154
    %s176 = sphi 0, %s178
    %s179 = sphi 0, %s176
    %s180 = sphi 0, %s179
    %s196 = sphi 0, %s180
  $region4: #{downsampler_block.1} parent=0 // loop_header_branch
    %15 = sbr.rel (%p13) target = $region8
  $region5: #{downsampler_block.1} parent=0 // loop_body
    %s17 = ssub.s32 %s12, 1
    %s18 = ssub.s32 %s12, 2
    %s25 = sadd.s32 1, %s20
    %p26 = scmp.ge.s32.totalorder %s25, 1
    %s27 = scalar_select %p26, 0, %s25
    %s28 = sadd.s32 1, %s19
    %s29 = scalar_select %p26, %s28, %s19
    %p30 = scmp.ge.s32.totalorder %s29, 2
    %s31 = scalar_select %p30, 0, %s29
    %s32 = ssub.s32 %s19, %s31
    %s33 = ssub.s32 %s20, %s27
    %s34 = sor.u32 %s32, %s33
    %p35 = scmp.eq.s32.totalorder %s34, 0
    %s37 = sadd.s32 %s36, 1
    %s38 = scalar_select %p35, %s36, %s37
    %p41 = pneg %p35
    %p42 = scmp.eq.s32.totalorder %s12, 1
    %p43 = por %p41, %p42
    %p44 = scmp.ne.s32.totalorder %s36, %s39
    %p45 = scmp.eq.s32.totalorder %s12, 0
    %p46 = por %p44, %p45
    %p47 = scmp.ne.s32.totalorder %s36, %s39
    %p48 = scmp.eq.s32.totalorder %s17, 1
    %p49 = por %p47, %p48
    %p50 = scmp.ne.s32.totalorder %s39, %s40
    %p51 = scmp.eq.s32.totalorder %s17, 0
    %p52 = por %p50, %p51
    %p53 = scmp.ne.s32.totalorder %s39, %s40
    %p54 = scmp.eq.s32.totalorder %s18, 1
    %p55 = por %p53, %p54
    %p57 = scmp.ne.s32.totalorder %s40, %s56
    %p58 = scmp.eq.s32.totalorder %s18, 0
    %p59 = por %p57, %p58
    %s60 = ssub.s32 %s19, %s31
    %s61 = ssub.s32 %s20, %s27
    %s62 = sor.u32 %s60, %s61
    %p63 = scmp.eq.s32.totalorder %s62, 0
    %s65 = sadd.s32 %s64, 1
    %s66 = scalar_select %p63, %s64, %s65
    %p69 = pneg %p63
    %p70 = scmp.eq.s32.totalorder %s12, 1
    %p71 = por %p69, %p70
    %p72 = scmp.ne.s32.totalorder %s64, %s67
    %p73 = scmp.eq.s32.totalorder %s12, 0
    %p74 = por %p72, %p73
    %p75 = scmp.ne.s32.totalorder %s64, %s67
    %p76 = scmp.eq.s32.totalorder %s17, 1
    %p77 = por %p75, %p76
    %p78 = scmp.ne.s32.totalorder %s67, %s68
    %p79 = scmp.eq.s32.totalorder %s17, 0
    %p80 = por %p78, %p79
    %p81 = scmp.ne.s32.totalorder %s67, %s68
    %p82 = scmp.eq.s32.totalorder %s18, 1
    %p83 = por %p81, %p82
    %p85 = scmp.ne.s32.totalorder %s68, %s84
    %p86 = scmp.eq.s32.totalorder %s18, 0
    %p87 = por %p85, %p86
    %s89 = sadd.s32 %s88, 1
    %p92 = scmp.eq.s32.totalorder %s12, 1
    %p93 = scmp.ne.s32.totalorder %s88, %s90
    %p94 = scmp.eq.s32.totalorder %s12, 0
    %p95 = por %p93, %p94
    %p96 = scmp.ne.s32.totalorder %s88, %s90
    %p97 = scmp.eq.s32.totalorder %s17, 1
    %p98 = por %p96, %p97
    %p99 = scmp.ne.s32.totalorder %s90, %s91
    %p100 = scmp.eq.s32.totalorder %s17, 0
    %p101 = por %p99, %p100
    %p102 = scmp.ne.s32.totalorder %s90, %s91
    %p103 = scmp.eq.s32.totalorder %s18, 1
    %p104 = por %p102, %p103
    %p106 = scmp.ne.s32.totalorder %s91, %s105
    %p107 = scmp.eq.s32.totalorder %s18, 0
    %p108 = por %p106, %p107
    %s110 = sadd.s32 %s109, 1
    %p113 = scmp.eq.s32.totalorder %s12, 1
    %p114 = scmp.ne.s32.totalorder %s109, %s111
    %p115 = scmp.eq.s32.totalorder %s12, 0
    %p116 = por %p114, %p115
    %p117 = scmp.ne.s32.totalorder %s109, %s111
    %p118 = scmp.eq.s32.totalorder %s17, 1
    %p119 = por %p117, %p118
    %p120 = scmp.ne.s32.totalorder %s111, %s112
    %p121 = scmp.eq.s32.totalorder %s17, 0
    %p122 = por %p120, %p121
    %p123 = scmp.ne.s32.totalorder %s111, %s112
    %p124 = scmp.eq.s32.totalorder %s18, 1
    %p125 = por %p123, %p124
    %p127 = scmp.ne.s32.totalorder %s112, %s126
    %p128 = scmp.eq.s32.totalorder %s18, 0
    %p129 = por %p127, %p128
    %s131 = sadd.s32 %s130, 1
    %p134 = scmp.eq.s32.totalorder %s12, 1
    %p135 = scmp.ne.s32.totalorder %s130, %s132
    %p136 = scmp.eq.s32.totalorder %s12, 0
    %p137 = por %p135, %p136
    %p138 = scmp.ne.s32.totalorder %s130, %s132
    %p139 = scmp.eq.s32.totalorder %s17, 1
    %p140 = por %p138, %p139
    %p141 = scmp.ne.s32.totalorder %s132, %s133
    %p142 = scmp.eq.s32.totalorder %s17, 0
    %p143 = por %p141, %p142
    %p144 = scmp.ne.s32.totalorder %s132, %s133
    %p145 = scmp.eq.s32.totalorder %s18, 1
    %p146 = por %p144, %p145
    %p148 = scmp.ne.s32.totalorder %s133, %s147
    %p149 = scmp.eq.s32.totalorder %s18, 0
    %p150 = por %p148, %p149
    %s152 = sadd.s32 %s151, 1
    %p155 = scmp.eq.s32.totalorder %s12, 1
    %p156 = scmp.ne.s32.totalorder %s151, %s153
    %p157 = scmp.eq.s32.totalorder %s12, 0
    %p158 = por %p156, %p157
    %p159 = scmp.ne.s32.totalorder %s151, %s153
    %p160 = scmp.eq.s32.totalorder %s17, 1
    %p161 = por %p159, %p160
    %p162 = scmp.ne.s32.totalorder %s153, %s154
    %p163 = scmp.eq.s32.totalorder %s17, 0
    %p164 = por %p162, %p163
    %p165 = scmp.ne.s32.totalorder %s153, %s154
    %p166 = scmp.eq.s32.totalorder %s18, 1
    %p167 = por %p165, %p166
    %p169 = scmp.ne.s32.totalorder %s154, %s168
    %p170 = scmp.eq.s32.totalorder %s18, 0
    %p171 = por %p169, %p170
    %s172 = ssub.s32 %s19, %s31
    %s173 = ssub.s32 %s20, %s27
    %s174 = sor.u32 %s172, %s173
    %p175 = scmp.eq.s32.totalorder %s174, 0
    %s177 = sadd.s32 %s176, 1
    %s178 = scalar_select %p175, %s176, %s177
    %p181 = pneg %p175
    %p182 = scmp.eq.s32.totalorder %s12, 1
    %p183 = por %p181, %p182
    %p184 = scmp.ne.s32.totalorder %s176, %s179
    %p185 = scmp.eq.s32.totalorder %s12, 0
    %p186 = por %p184, %p185
    %p187 = scmp.ne.s32.totalorder %s176, %s179
    %p188 = scmp.eq.s32.totalorder %s17, 1
    %p189 = por %p187, %p188
    %p190 = scmp.ne.s32.totalorder %s179, %s180
    %p191 = scmp.eq.s32.totalorder %s17, 0
    %p192 = por %p190, %p191
    %p193 = scmp.ne.s32.totalorder %s179, %s180
    %p194 = scmp.eq.s32.totalorder %s18, 1
    %p195 = por %p193, %p194
    %p197 = scmp.ne.s32.totalorder %s180, %s196
    %p198 = scmp.eq.s32.totalorder %s18, 0
    %p199 = por %p197, %p198
    %p200 = scmp.le.s32.totalorder 1, %s12
    %p201 = scmp.lt.s32.totalorder %s12, 3
    %p202 = pnand %p200, %p201
    %p203 = pneg %p202
    // Predicated region
    $region9: #{downsampler_block.1} parent=5 // pred_check
      _
    $region10: #{downsampler_block.1} parent=5 // pred_check_branch
      %205 = sbr.rel (%p202) target = $region12
    $region11: #{downsampler_block.1} parent=5 // pred_region
      %s206 = ssub.s32 %s12, 1
      // Predicated region
      $region13: #{downsampler_block.1} parent=11 // pred_check
        %p207 = pneg %p101
      $region14: #{downsampler_block.1} parent=11 // pred_check_branch
        %209 = sbr.rel (%p207) target = $region16
      $region15: #{downsampler_block.1} parent=11 // pred_region
        _
      $region16: #{downsampler_block.1} parent=11 // pred_fallthru
        _
      // Predicated region
      $region17: #{downsampler_block.1} parent=11 // pred_check
        %p210 = pneg %p122
      $region18: #{downsampler_block.1} parent=11 // pred_check_branch
        %212 = sbr.rel (%p210) target = $region20
      $region19: #{downsampler_block.1} parent=11 // pred_region
        _
      $region20: #{downsampler_block.1} parent=11 // pred_fallthru
        _
      // Predicated region
      $region21: #{downsampler_block.1} parent=11 // pred_check
        %p213 = pneg %p143
      $region22: #{downsampler_block.1} parent=11 // pred_check_branch
        %215 = sbr.rel (%p213) target = $region24
      $region23: #{downsampler_block.1} parent=11 // pred_region
        _
      $region24: #{downsampler_block.1} parent=11 // pred_fallthru
        _
      // Predicated region
      $region25: #{downsampler_block.1} parent=11 // pred_check
        %p216 = pneg %p164
      $region26: #{downsampler_block.1} parent=11 // pred_check_branch
        %218 = sbr.rel (%p216) target = $region28
      $region27: #{downsampler_block.1} parent=11 // pred_region
        _
      $region28: #{downsampler_block.1} parent=11 // pred_fallthru
        _
    $region12: #{downsampler_block.1} parent=5 // pred_fallthru
      _
    %p219 = scmp.lt.s32.totalorder %s12, 2
    // Predicated region
    $region29: #{downsampler_block.1} parent=5 // pred_check
      %p220 = pneg %p219
    $region30: #{downsampler_block.1} parent=5 // pred_check_branch
      %222 = sbr.rel (%p220) target = $region32
    $region31: #{downsampler_block.1} parent=5 // pred_region
      // Predicated region
      $region33: #{downsampler_block.1} parent=31 // pred_check
        %p223 = pneg %p46
      $region34: #{downsampler_block.1} parent=31 // pred_check_branch
        %225 = sbr.rel (%p223) target = $region36
      $region35: #{downsampler_block.1} parent=31 // pred_region
        %p226 = scmp.lt.s32.totalorder %s19, 1
        %s227 = scalar_select %p226, %s19, 1
        %p228 = scmp.lt.s32.totalorder %s20, 0
        %s229 = scalar_select %p228, %s20, 0
        %s230 = smul.addr %s229, 9
        %s231 = smul.addr %s227, 9
        %s232 = sadd.s32 %s230, %s231
        %s233 = smul.addr %s232, 8
        %s234 = scalar_lea.vmem %s0, %s233
      $region36: #{downsampler_block.1} parent=31 // pred_fallthru
        _
      // Predicated region
      $region37: #{downsampler_block.1} parent=31 // pred_check
        %p235 = pneg %p74
      $region38: #{downsampler_block.1} parent=31 // pred_check_branch
        %237 = sbr.rel (%p235) target = $region40
      $region39: #{downsampler_block.1} parent=31 // pred_region
        %s238 = smul.u32 8, %s20
        %p239 = scmp.lt.s32.totalorder %s19, 1
        %s240 = scalar_select %p239, %s19, 1
        %p241 = scmp.lt.s32.totalorder %s238, 7
        %s242 = scalar_select %p241, %s238, 7
        %s243 = smul.addr %s240, 8
        %s244 = sadd.s32 %s242, %s243
        %s245 = smul.addr %s244, 8
        %s246 = scalar_lea.vmem %s1, %s245
        %s247 = smul.u32 8, %s20
      $region40: #{downsampler_block.1} parent=31 // pred_fallthru
        _
    $region32: #{downsampler_block.1} parent=5 // pred_fallthru
      _
    %p248 = scmp.le.s32.totalorder 1, %s12
    %p249 = scmp.lt.s32.totalorder %s12, 3
    %p250 = pnand %p248, %p249
    %p251 = pneg %p250
    // Predicated region
    $region41: #{downsampler_block.1} parent=5 // pred_check
      _
    $region42: #{downsampler_block.1} parent=5 // pred_check_branch
      %253 = sbr.rel (%p250) target = $region44
    $region43: #{downsampler_block.1} parent=5 // pred_region
      %s254 = ssub.s32 %s12, 1
      %p255 = scmp.lt.s32.totalorder %s21, 1
      %s256 = scalar_select %p255, %s21, 1
      %p257 = scmp.lt.s32.totalorder %s22, 0
      %s258 = scalar_select %p257, %s22, 0
      %s259 = smul.addr %s258, 9
      %s260 = smul.addr %s256, 9
      %s261 = sadd.s32 %s259, %s260
      %s262 = smul.addr %s261, 8
      %s263 = scalar_lea.vmem %s0, %s262
      %p264 = pneg %p52
      %p265 = pneg %p49
      %s266 = smul.u32 8, %s22
      %p267 = scmp.lt.s32.totalorder %s21, 1
      %s268 = scalar_select %p267, %s21, 1
      %p269 = scmp.lt.s32.totalorder %s266, 7
      %s270 = scalar_select %p269, %s266, 7
      %s271 = smul.addr %s268, 8
      %s272 = sadd.s32 %s270, %s271
      %s273 = smul.addr %s272, 8
      %s274 = scalar_lea.vmem %s1, %s273
      %p275 = pneg %p80
      %p276 = pneg %p77
      %p277 = pneg %p101
      %p278 = pneg %p98
      %p279 = pneg %p122
      %p280 = pneg %p119
      %p281 = pneg %p143
      %p282 = pneg %p140
      %p283 = pneg %p164
      %p284 = pneg %p161
      %p285 = pneg %p192
      %p286 = pneg %p189
      %p287 = scmp.lt.s32.totalorder %s21, 1
      %s288 = scalar_select %p287, %s21, 1
      %p289 = scmp.lt.s32.totalorder %s22, 0
      %s290 = scalar_select %p289, %s22, 0
      %s291 = smul.addr %s288, 2
      %s292 = sadd.s32 %s290, %s291
      %s293 = smul.addr %s292, 8
      %s294 = scalar_lea.vmem %s6, %s293
      %p295 = scmp.lt.s32.totalorder %s21, 1
      %s296 = scalar_select %p295, %s21, 1
      %p297 = scmp.lt.s32.totalorder %s22, 0
      %s298 = scalar_select %p297, %s22, 0
      %s299 = smul.addr %s298, 9
      %s300 = smul.addr %s296, 9
      %s301 = sadd.s32 %s299, %s300
      %s302 = smul.addr %s301, 8
      %s303 = scalar_lea.vmem %s0, %s302
      %s304 = smul.u32 8, %s22
      %p305 = scmp.lt.s32.totalorder %s21, 1
      %s306 = scalar_select %p305, %s21, 1
      %p307 = scmp.lt.s32.totalorder %s304, 7
      %s308 = scalar_select %p307, %s304, 7
      %s309 = smul.addr %s306, 8
      %s310 = sadd.s32 %s308, %s309
      %s311 = smul.addr %s310, 8
      %s312 = scalar_lea.vmem %s1, %s311
      %s313 = smul.u32 8, %s22
      %p314 = scmp.lt.s32.totalorder %s21, 1
      %s315 = scalar_select %p314, %s21, 1
      %p316 = scmp.lt.s32.totalorder %s22, 0
      %s317 = scalar_select %p316, %s22, 0
      %s318 = smul.addr %s315, 2
      %s319 = sadd.s32 %s317, %s318
      %s320 = smul.addr %s319, 8
      %s321 = scalar_lea.vmem %s6, %s320
      %v322 = vld [vmem:[%s303] sm:$0xff]
      %v323 = vld [vmem:[%s312] sm:$0xff]
      %s324 = scalar_lea.vmem %s303, 8
      %v325 = vld [vmem:[%s324] sm:$0xff]
      %vm326 = vcmask 60416
      %327 = vst.msk [vmem:[#allocation2] sm:$0xf] %vm326, %v322
      %vm328 = vcmask 64516
      %329 = vst.msk [vmem:[#allocation2] sm:$0xf0] %vm328, %v322
      %331 = vrot.lane.b32.xlu0 %v322, 127
      %v332 = vpop.permute.xlu0 %331
      %334 = vst.msk [vmem:[#allocation2 + $0x8] sm:$0xf] %vm326, %v332
      %335 = vst.msk [vmem:[#allocation2 + $0xc] sm:$0xf] %vm326, %v323
      %336 = vst.msk [vmem:[#allocation2 + $0xc] sm:$0xf0] %vm328, %v323
      %338 = vrot.lane.b32.xlu0 %v323, 127
      %v339 = vpop.permute.xlu0 %338
      %341 = vst.msk [vmem:[#allocation2 + $0x14] sm:$0xf] %vm326, %v339
      %342 = vst.msk [vmem:[#allocation2 + $0x18] sm:$0xf] %vm326, %v325
      %343 = vst.msk [vmem:[#allocation2 + $0x18] sm:$0xf0] %vm328, %v325
      %345 = vrot.lane.b32.xlu0 %v325, 127
      %v346 = vpop.permute.xlu0 %345
      %348 = vst.msk [vmem:[#allocation2 + $0x20] sm:$0xf] %vm326, %v346
      %v349 = vld [vmem:[%s324] sm:$0xff]
      %s350 = scalar_lea.vmem %s312, 8
      %v351 = vld [vmem:[%s350] sm:$0xff]
      %s352 = scalar_lea.vmem %s303, 16
      %v353 = vld [vmem:[%s352] sm:$0xff]
      %355 = vrot.lane.b32.xlu0 %v349, 8
      %v356 = vpop.permute.xlu0 %355
      %vm358 = vcmask 126016
      %359 = vst.msk [vmem:[#allocation2] sm:$0xf] %vm358, %v356
      %vm360 = vcmask 130116
      %361 = vst.msk [vmem:[#allocation2] sm:$0xf0] %vm360, %v356
      %362 = vrot.lane.b32.xlu0 %v349, 7
      %v363 = vpop.permute.xlu0 %362
      %365 = vst.msk [vmem:[#allocation2 + $0x8] sm:$0xf] %vm358, %v363
      %367 = vrot.lane.b32.xlu0 %v351, 8
      %v368 = vpop.permute.xlu0 %367
      %370 = vst.msk [vmem:[#allocation2 + $0xc] sm:$0xf] %vm358, %v368
      %371 = vst.msk [vmem:[#allocation2 + $0xc] sm:$0xf0] %vm360, %v368
      %372 = vrot.lane.b32.xlu0 %v351, 7
      %v373 = vpop.permute.xlu0 %372
      %375 = vst.msk [vmem:[#allocation2 + $0x14] sm:$0xf] %vm358, %v373
      %377 = vrot.lane.b32.xlu0 %v353, 8
      %v378 = vpop.permute.xlu0 %377
      %380 = vst.msk [vmem:[#allocation2 + $0x18] sm:$0xf] %vm358, %v378
      %381 = vst.msk [vmem:[#allocation2 + $0x18] sm:$0xf0] %vm360, %v378
      %382 = vrot.lane.b32.xlu0 %v353, 7
      %v383 = vpop.permute.xlu0 %382
      %385 = vst.msk [vmem:[#allocation2 + $0x20] sm:$0xf] %vm358, %v383
      %v386 = vld [vmem:[%s352] sm:$0xff]
      %s387 = scalar_lea.vmem %s312, 16
      %v388 = vld [vmem:[%s387] sm:$0xff]
      %s389 = scalar_lea.vmem %s303, 24
      %v390 = vld [vmem:[%s389] sm:$0xff]
      %392 = vrot.lane.b32.xlu0 %v386, 16
      %v393 = vpop.permute.xlu0 %392
      %vm395 = vcmask 191616
      %396 = vst.msk [vmem:[#allocation2] sm:$0xf] %vm395, %v393
      %vm397 = vcmask 195716
      %398 = vst.msk [vmem:[#allocation2] sm:$0xf0] %vm397, %v393
      %399 = vrot.lane.b32.xlu0 %v386, 15
      %v400 = vpop.permute.xlu0 %399
      %402 = vst.msk [vmem:[#allocation2 + $0x8] sm:$0xf] %vm395, %v400
      %404 = vrot.lane.b32.xlu0 %v388, 16
      %v405 = vpop.permute.xlu0 %404
      %407 = vst.msk [vmem:[#allocation2 + $0xc] sm:$0xf] %vm395, %v405
      %408 = vst.msk [vmem:[#allocation2 + $0xc] sm:$0xf0] %vm397, %v405
      %409 = vrot.lane.b32.xlu0 %v388, 15
      %v410 = vpop.permute.xlu0 %409
      %412 = vst.msk [vmem:[#allocation2 + $0x14] sm:$0xf] %vm395, %v410
      %414 = vrot.lane.b32.xlu0 %v390, 16
      %v415 = vpop.permute.xlu0 %414
      %417 = vst.msk [vmem:[#allocation2 + $0x18] sm:$0xf] %vm395, %v415
      %418 = vst.msk [vmem:[#allocation2 + $0x18] sm:$0xf0] %vm397, %v415
      %419 = vrot.lane.b32.xlu0 %v390, 15
      %v420 = vpop.permute.xlu0 %419
      %422 = vst.msk [vmem:[#allocation2 + $0x20] sm:$0xf] %vm395, %v420
      %v423 = vld [vmem:[%s389] sm:$0xff]
      %s424 = scalar_lea.vmem %s312, 24
      %v425 = vld [vmem:[%s424] sm:$0xff]
      %s426 = scalar_lea.vmem %s303, 32
      %v427 = vld [vmem:[%s426] sm:$0xff]
      %429 = vrot.lane.b32.xlu0 %v423, 24
      %v430 = vpop.permute.xlu0 %429
      %vm432 = vcmask 257216
      %433 = vst.msk [vmem:[#allocation2] sm:$0xf] %vm432, %v430
      %vm434 = vcmask 261316
      %435 = vst.msk [vmem:[#allocation2] sm:$0xf0] %vm434, %v430
      %436 = vrot.lane.b32.xlu0 %v423, 23
      %v437 = vpop.permute.xlu0 %436
      %439 = vst.msk [vmem:[#allocation2 + $0x8] sm:$0xf] %vm432, %v437
      %441 = vrot.lane.b32.xlu0 %v425, 24
      %v442 = vpop.permute.xlu0 %441
      %444 = vst.msk [vmem:[#allocation2 + $0xc] sm:$0xf] %vm432, %v442
      %445 = vst.msk [vmem:[#allocation2 + $0xc] sm:$0xf0] %vm434, %v442
      %446 = vrot.lane.b32.xlu0 %v425, 23
      %v447 = vpop.permute.xlu0 %446
      %449 = vst.msk [vmem:[#allocation2 + $0x14] sm:$0xf] %vm432, %v447
      %451 = vrot.lane.b32.xlu0 %v427, 24
      %v452 = vpop.permute.xlu0 %451
      %454 = vst.msk [vmem:[#allocation2 + $0x18] sm:$0xf] %vm432, %v452
      %455 = vst.msk [vmem:[#allocation2 + $0x18] sm:$0xf0] %vm434, %v452
      %456 = vrot.lane.b32.xlu0 %v427, 23
      %v457 = vpop.permute.xlu0 %456
      %459 = vst.msk [vmem:[#allocation2 + $0x20] sm:$0xf] %vm432, %v457
      %v460 = vld [vmem:[%s426] sm:$0xff]
      %s461 = scalar_lea.vmem %s312, 32
      %v462 = vld [vmem:[%s461] sm:$0xff]
      %s463 = scalar_lea.vmem %s303, 40
      %v464 = vld [vmem:[%s463] sm:$0xff]
      %466 = vrot.lane.b32.xlu0 %v460, 32
      %v467 = vpop.permute.xlu0 %466
      %vm469 = vcmask 322816
      %470 = vst.msk [vmem:[#allocation2] sm:$0xf] %vm469, %v467
      %vm471 = vcmask 326916
      %472 = vst.msk [vmem:[#allocation2] sm:$0xf0] %vm471, %v467
      %473 = vrot.lane.b32.xlu0 %v460, 31
      %v474 = vpop.permute.xlu0 %473
      %476 = vst.msk [vmem:[#allocation2 + $0x8] sm:$0xf] %vm469, %v474
      %478 = vrot.lane.b32.xlu0 %v462, 32
      %v479 = vpop.permute.xlu0 %478
      %481 = vst.msk [vmem:[#allocation2 + $0xc] sm:$0xf] %vm469, %v479
      %482 = vst.msk [vmem:[#allocation2 + $0xc] sm:$0xf0] %vm471, %v479
      %483 = vrot.lane.b32.xlu0 %v462, 31
      %v484 = vpop.permute.xlu0 %483
      %486 = vst.msk [vmem:[#allocation2 + $0x14] sm:$0xf] %vm469, %v484
      %488 = vrot.lane.b32.xlu0 %v464, 32
      %v489 = vpop.permute.xlu0 %488
      %491 = vst.msk [vmem:[#allocation2 + $0x18] sm:$0xf] %vm469, %v489
      %492 = vst.msk [vmem:[#allocation2 + $0x18] sm:$0xf0] %vm471, %v489
      %493 = vrot.lane.b32.xlu0 %v464, 31
      %v494 = vpop.permute.xlu0 %493
      %496 = vst.msk [vmem:[#allocation2 + $0x20] sm:$0xf] %vm469, %v494
      %v497 = vld [vmem:[%s463] sm:$0xff]
      %s498 = scalar_lea.vmem %s312, 40
      %v499 = vld [vmem:[%s498] sm:$0xff]
      %s500 = scalar_lea.vmem %s303, 48
      %v501 = vld [vmem:[%s500] sm:$0xff]
      %503 = vrot.lane.b32.xlu0 %v497, 40
      %v504 = vpop.permute.xlu0 %503
      %vm506 = vcmask 388416
      %507 = vst.msk [vmem:[#allocation2] sm:$0xf] %vm506, %v504
      %vm508 = vcmask 392516
      %509 = vst.msk [vmem:[#allocation2] sm:$0xf0] %vm508, %v504
      %510 = vrot.lane.b32.xlu0 %v497, 39
      %v511 = vpop.permute.xlu0 %510
      %513 = vst.msk [vmem:[#allocation2 + $0x8] sm:$0xf] %vm506, %v511
      %515 = vrot.lane.b32.xlu0 %v499, 40
      %v516 = vpop.permute.xlu0 %515
      %518 = vst.msk [vmem:[#allocation2 + $0xc] sm:$0xf] %vm506, %v516
      %519 = vst.msk [vmem:[#allocation2 + $0xc] sm:$0xf0] %vm508, %v516
      %520 = vrot.lane.b32.xlu0 %v499, 39
      %v521 = vpop.permute.xlu0 %520
      %523 = vst.msk [vmem:[#allocation2 + $0x14] sm:$0xf] %vm506, %v521
      %525 = vrot.lane.b32.xlu0 %v501, 40
      %v526 = vpop.permute.xlu0 %525
      %528 = vst.msk [vmem:[#allocation2 + $0x18] sm:$0xf] %vm506, %v526
      %529 = vst.msk [vmem:[#allocation2 + $0x18] sm:$0xf0] %vm508, %v526
      %530 = vrot.lane.b32.xlu0 %v501, 39
      %v531 = vpop.permute.xlu0 %530
      %533 = vst.msk [vmem:[#allocation2 + $0x20] sm:$0xf] %vm506, %v531
      %v534 = vld [vmem:[%s500] sm:$0xff]
      %s535 = scalar_lea.vmem %s312, 48
      %v536 = vld [vmem:[%s535] sm:$0xff]
      %s537 = scalar_lea.vmem %s303, 56
      %v538 = vld [vmem:[%s537] sm:$0xff]
      %540 = vrot.lane.b32.xlu0 %v534, 48
      %v541 = vpop.permute.xlu0 %540
      %vm543 = vcmask 454016
      %544 = vst.msk [vmem:[#allocation2] sm:$0xf] %vm543, %v541
      %vm545 = vcmask 458116
      %546 = vst.msk [vmem:[#allocation2] sm:$0xf0] %vm545, %v541
      %547 = vrot.lane.b32.xlu0 %v534, 47
      %v548 = vpop.permute.xlu0 %547
      %550 = vst.msk [vmem:[#allocation2 + $0x8] sm:$0xf] %vm543, %v548
      %552 = vrot.lane.b32.xlu0 %v536, 48
      %v553 = vpop.permute.xlu0 %552
      %555 = vst.msk [vmem:[#allocation2 + $0xc] sm:$0xf] %vm543, %v553
      %556 = vst.msk [vmem:[#allocation2 + $0xc] sm:$0xf0] %vm545, %v553
      %557 = vrot.lane.b32.xlu0 %v536, 47
      %v558 = vpop.permute.xlu0 %557
      %560 = vst.msk [vmem:[#allocation2 + $0x14] sm:$0xf] %vm543, %v558
      %562 = vrot.lane.b32.xlu0 %v538, 48
      %v563 = vpop.permute.xlu0 %562
      %565 = vst.msk [vmem:[#allocation2 + $0x18] sm:$0xf] %vm543, %v563
      %566 = vst.msk [vmem:[#allocation2 + $0x18] sm:$0xf0] %vm545, %v563
      %567 = vrot.lane.b32.xlu0 %v538, 47
      %v568 = vpop.permute.xlu0 %567
      %570 = vst.msk [vmem:[#allocation2 + $0x20] sm:$0xf] %vm543, %v568
      %v571 = vld [vmem:[%s537] sm:$0xff]
      %s572 = scalar_lea.vmem %s312, 56
      %v573 = vld [vmem:[%s572] sm:$0xff]
      %s574 = scalar_lea.vmem %s303, 64
      %v575 = vld [vmem:[%s574] sm:$0xff]
      %577 = vrot.lane.b32.xlu0 %v571, 56
      %v578 = vpop.permute.xlu0 %577
      %vm580 = vcmask 519616
      %581 = vst.msk [vmem:[#allocation2] sm:$0xf] %vm580, %v578
      %vm582 = vcmask 523716
      %583 = vst.msk [vmem:[#allocation2] sm:$0xf0] %vm582, %v578
      %584 = vrot.lane.b32.xlu0 %v571, 55
      %v585 = vpop.permute.xlu0 %584
      %587 = vst.msk [vmem:[#allocation2 + $0x8] sm:$0xf] %vm580, %v585
      %589 = vrot.lane.b32.xlu0 %v573, 56
      %v590 = vpop.permute.xlu0 %589
      %592 = vst.msk [vmem:[#allocation2 + $0xc] sm:$0xf] %vm580, %v590
      %593 = vst.msk [vmem:[#allocation2 + $0xc] sm:$0xf0] %vm582, %v590
      %594 = vrot.lane.b32.xlu0 %v573, 55
      %v595 = vpop.permute.xlu0 %594
      %597 = vst.msk [vmem:[#allocation2 + $0x14] sm:$0xf] %vm580, %v595
      %599 = vrot.lane.b32.xlu0 %v575, 56
      %v600 = vpop.permute.xlu0 %599
      %602 = vst.msk [vmem:[#allocation2 + $0x18] sm:$0xf] %vm580, %v600
      %603 = vst.msk [vmem:[#allocation2 + $0x18] sm:$0xf0] %vm582, %v600
      %604 = vrot.lane.b32.xlu0 %v575, 55
      %v605 = vpop.permute.xlu0 %604
      %607 = vst.msk [vmem:[#allocation2 + $0x20] sm:$0xf] %vm580, %v605
      %v608 = vld [vmem:[%s2] sm:$0xff]
      %v609 = vld [vmem:[%s2 + $0x8] sm:$0xf]
      %v610 = vld [vmem:[#allocation2] sm:$0xff]
      %v611 = vld [vmem:[#allocation2 + $0x8] sm:$0xff]
      %v612 = vld [vmem:[#allocation2 + $0x10] sm:$0xff]
      %v613 = vld [vmem:[#allocation2 + $0x18] sm:$0xff]
      %v614 = vld [vmem:[#allocation2 + $0x20] sm:$0xf]
      %v615 = vld [vmem:[%s3] sm:$0xff]
      %v616 = vld [vmem:[%s3 + $0x8] sm:$0xf]
      %618 = vset.pattern.permute.xlu0 0
      %619 = vperm.xlu0 %618, %v615
      %v620 = vpop.permute.xlu0 %619
      %623 = vset.pattern.permute.xlu0 0
      %624 = vperm.xlu0 %623, %v616
      %v625 = vpop.permute.xlu0 %624
      %vm627 = vcmask 293888
      %v629 = vsel %vm627, %v608, 0
      %v632 = vsel %vm627, %v609, 0
      %vm634 = vcmask 1043456
      %v636 = vsel %vm634, %v614, 0
      %638 = vmatpush.msra.mxu0 0.0
      %639 = vmatpush.msra.mxu0 0.0
      %640 = vmatpush.msra.mxu0 0.0
      %641 = vmatpush.msra.mxu0 0.0
      %642 = vmatpush.msra.mxu0 0.0
      %643 = vmatpush.msra.mxu0 0.0
      %644 = vmatpush.msra.mxu0 0.0
      %645 = vmatpush.msra.mxu0 0.0
      %646 = vmatpush.msra.mxu0 0.0
      %647 = vmatpush.msra.mxu0 0.0
      %648 = vmatpush.msra.mxu0 0.0
      %649 = vmatpush.msra.mxu0 %v636
      %650 = vmatpush.msra.mxu0 %v613
      %651 = vmatpush.msra.mxu0 %v612
      %652 = vmatpush.msra.mxu0 %v611
      %653 = vmatpush.msra.mxu0 %v610
      %654 = vmatmul.f32.gmra.mxu0 %v629
      %v655 = vpop.f32.mrf.mxu0
      %v656 = vadd.f32 %v620, %v655
      %657 = vmatmul.f32.gmra.mxu0 %v632
      %v658 = vpop.f32.mrf.mxu0
      %v659 = vadd.f32 %v625, %v658
      %660 = vdwg.mxu0
      %v661 = vld [vmem:[#allocation2 + $0x10] sm:$0xf]
      %v662 = vld [vmem:[#allocation2 + $0x14] sm:$0xf]
      %v663 = vmax.f32 %v661, %v662
      %v664 = vld [vmem:[#allocation2 + $0x1c] sm:$0xf]
      %v665 = vmax.f32 %v664, %v614
      %v666 = vmax.f32 %v663, %v665
      %v667 = vld [vmem:[%s4] sm:$0xf]
      %669 = vset.pattern.permute.xlu0 0
      %670 = vperm.xlu0 %669, %v667
      %v671 = vpop.permute.xlu0 %670
      %v673 = vmul.f32 %v666, %v671
      %v674 = vld [vmem:[%s5] sm:$0xf]
      %676 = vset.pattern.permute.xlu0 0
      %677 = vperm.xlu0 %676, %v674
      %v678 = vpop.permute.xlu0 %677
      %v680 = vadd.f32 %v673, %v678
      %v681 = vmax.f32 %v656, 0.0
      %v682 = vmax.f32 %v659, 0.0
      %vm683 = vcmask 523264
      %684 = vst.msk [vmem:[%s321] sm:$0xff] %vm683, %v681
      %vm685 = vcmask 519168
      %686 = vst.msk [vmem:[%s321 + $0x8] sm:$0xf] %vm685, %v682
      %v687 = vmax.f32 %v680, 0.0
      %688 = vst.msk [vmem:[%s321 + $0xc] sm:$0xf] %vm685, %v687
      %p689 = scmp.lt.s32.totalorder %s21, 1
      %s690 = scalar_select %p689, %s21, 1
      %p691 = scmp.lt.s32.totalorder %s22, 0
      %s692 = scalar_select %p691, %s22, 0
      %s693 = smul.addr %s690, 2
      %s694 = sadd.s32 %s692, %s693
      %s695 = smul.addr %s694, 8
      %s696 = scalar_lea.vmem %s6, %s695
      // Predicated region
      $region45: #{downsampler_block.1} parent=43 // pred_check
        %p697 = pneg %p189
      $region46: #{downsampler_block.1} parent=43 // pred_check_branch
        %699 = sbr.rel (%p697) target = $region48
      $region47: #{downsampler_block.1} parent=43 // pred_region
        _
      $region48: #{downsampler_block.1} parent=43 // pred_fallthru
        _
    $region44: #{downsampler_block.1} parent=5 // pred_fallthru
      _
    %p700 = scmp.le.s32.totalorder 2, %s12
    // Predicated region
    $region49: #{downsampler_block.1} parent=5 // pred_check
      %p701 = pneg %p700
    $region50: #{downsampler_block.1} parent=5 // pred_check_branch
      %703 = sbr.rel (%p701) target = $region52
    $region51: #{downsampler_block.1} parent=5 // pred_region
      %s704 = ssub.s32 %s12, 2
      // Predicated region
      $region53: #{downsampler_block.1} parent=51 // pred_check
        %p705 = pneg %p195
      $region54: #{downsampler_block.1} parent=51 // pred_check_branch
        %707 = sbr.rel (%p705) target = $region56
      $region55: #{downsampler_block.1} parent=51 // pred_region
        %p708 = scmp.lt.s32.totalorder %s23, 1
        %s709 = scalar_select %p708, %s23, 1
        %p710 = scmp.lt.s32.totalorder %s24, 0
        %s711 = scalar_select %p710, %s24, 0
        %s712 = smul.addr %s709, 2
        %s713 = sadd.s32 %s711, %s712
        %s714 = smul.addr %s713, 8
        %s715 = scalar_lea.vmem %s6, %s714
      $region56: #{downsampler_block.1} parent=51 // pred_fallthru
        _
    $region52: #{downsampler_block.1} parent=5 // pred_fallthru
      _
  $region6: #{downsampler_block.1} parent=0 // loop_footer
    %s16 = sadd.s32 1, %s12
  $region7: #{downsampler_block.1} parent=0 // loop_footer_branch
    %11 = sbr.rel target = $region3
  $region8: #{downsampler_block.1} parent=0 // loop_exit
    _

</llo_original>
